<compile_context>
chip_gen: v7x
topology: tpu7x:2x2x1
jax: 0.10.0
libtpu: 0.0.40
codegen_flags: <defaults>
</compile_context>

<pallas_src>
import functools

import jax
import jax.numpy as jnp
import numpy as np
from jax.experimental import pallas as pl
from jax.experimental.pallas import tpu as pltpu

_LANE = 128  # TPU lane width: pad channel (minor) dims to a multiple of this.


def _round_up(n, m):
    return ((n + m - 1) // m) * m


# ----------------------------------------------------------------------------
# Kernel helpers
# ----------------------------------------------------------------------------
def _bn_mish(acc, scale, shift):
    """Folded conv-bias+BatchNorm (scale/shift) followed by Mish, in f32.

    Mish(y) = y * tanh(softplus(y)), and
    tanh(softplus(y)) = ((1+e^y)^2 - 1) / ((1+e^y)^2 + 1)
    -> one EUP exp + one approx reciprocal instead of exp + log1p + tanh.
    """
    y = acc * scale + shift
    t = jnp.exp(jnp.minimum(y, 20.0))        # softplus threshold=20 (PyTorch)
    u = (1.0 + t) * (1.0 + t)
    tsp = jnp.where(y > 20.0, 1.0,
                    (u - 1.0) * pl.reciprocal(u + 1.0, approx=True))
    return y * tsp


def _scatter_taps(patches_ref, img, c, hp, wp):
    """Write the 9 shifted 3x3 taps of img (hp, wp, c) into the im2col scratch
    patches_ref (hp, wp, 9*c). Border regions stay zero (scratch is zeroed by
    the caller) which implements conv padding=1."""
    for dy in range(3):
        for dx in range(3):
            t = dy * 3 + dx
            ky, kx = dy - 1, dx - 1
            ys, ye = max(0, -ky), hp - max(0, ky)
            xs, xe = max(0, -kx), wp - max(0, kx)
            if ys < ye and xs < xe:
                patches_ref[ys:ye, xs:xe, t * c:(t + 1) * c] = (
                    img[ys + ky:ye + ky, xs + kx:xe + kx, :])


# ----------------------------------------------------------------------------
# Fused kernel: 2x2 maxpool -> (conv3x3 + BN + Mish) x 2
# ----------------------------------------------------------------------------
def _down_fused_kernel(x_ref, w1_ref, s1_ref, b1_ref, w2_ref, s2_ref, b2_ref,
                       o_ref, p1_ref, p2_ref):
    # x_ref : (2*Hp, Wp, 2*Cin)   input with W folded as (W/2, 2*Cin)
    # w1_ref: (9*Cin, Cmid_p)     im2col conv1 weights (zero-padded channels)
    # w2_ref: (9*Cmid_p, Cout_p)  im2col conv2 weights
    # s*/b* : (1, C*_p)           folded conv-bias + BN scale / shift (f32)
    # o_ref : (Hp, Wp, Cout_p)    lane-dense output block (Cout_p % 128 == 0)
    # p1/p2 : f32 VMEM im2col scratch
    hp, wp, cout_p = o_ref.shape
    cin = x_ref.shape[-1] // 2
    cmid_p = w1_ref.shape[-1]

    # ---- fused 2x2 max pool (no strided loads, no HBM phase copies) --------
    x = x_ref[...]                                          # (2*Hp, Wp, 2*Cin)
    xw = jnp.maximum(x[..., :cin], x[..., cin:])            # pool along W
    pooled = jnp.max(xw.reshape(hp, 2, wp, cin), axis=1)    # pool along H

    # ---- conv1 + BN + Mish: one im2col matmul on the MXU -------------------
    p1_ref[...] = jnp.zeros(p1_ref.shape, p1_ref.dtype)
    _scatter_taps(p1_ref, pooled, cin, hp, wp)
    lhs1 = p1_ref[...].reshape(hp * wp, 9 * cin).astype(w1_ref.dtype)
    h = jnp.dot(lhs1, w1_ref[...], preferred_element_type=jnp.float32)
    h = _bn_mish(h, s1_ref[...], b1_ref[...])               # (Hp*Wp, Cmid_p)

    # ---- conv2 + BN + Mish --------------------------------------------------
    p2_ref[...] = jnp.zeros(p2_ref.shape, p2_ref.dtype)
    _scatter_taps(p2_ref, h.reshape(hp, wp, cmid_p), cmid_p, hp, wp)
    lhs2 = p2_ref[...].reshape(hp * wp, 9 * cmid_p).astype(w2_ref.dtype)
    out = jnp.dot(lhs2, w2_ref[...], preferred_element_type=jnp.float32)
    out = _bn_mish(out, s2_ref[...], b2_ref[...])           # (Hp*Wp, Cout_p)

    o_ref[...] = out.reshape(hp, wp, cout_p).astype(o_ref.dtype)


# ----------------------------------------------------------------------------
# Parameter folding / packing
# ----------------------------------------------------------------------------
def pack_params(raw, *, weight_dtype=jnp.float32, eps=1e-5):
    """Fold conv bias + eval-mode BN into per-channel scale/shift and pack the
    conv weights into lane-dense im2col form (channels padded to 128)."""
    w1, b1, g1, be1, m1, v1 = raw["conv1"]
    w2, b2, g2, be2, m2, v2 = raw["conv2"]
    cmid, cin = w1.shape[0], w1.shape[1]
    cout = w2.shape[0]
    cmid_p = _round_up(cmid, _LANE)
    cout_p = _round_up(cout, _LANE)

    def fold(w_oihw, bias, gamma, beta, mean, var, cin_pad, cout_pad):
        co, ci, kh, kw = w_oihw.shape
        scale = gamma * jax.lax.rsqrt(var + eps)
        shift = (bias - mean) * scale + beta
        w = jnp.transpose(w_oihw, (2, 3, 1, 0))             # OIHW -> HWIO
        w = jnp.pad(w, ((0, 0), (0, 0), (0, cin_pad - ci), (0, cout_pad - co)))
        w = w.reshape(kh * kw * cin_pad, cout_pad).astype(weight_dtype)
        scale = jnp.pad(scale, (0, cout_pad - co)).reshape(1, cout_pad)
        shift = jnp.pad(shift, (0, cout_pad - co)).reshape(1, cout_pad)
        return w, scale.astype(jnp.float32), shift.astype(jnp.float32)

    w1k, s1, sh1 = fold(w1, b1, g1, be1, m1, v1, cin, cmid_p)
    w2k, s2, sh2 = fold(w2, b2, g2, be2, m2, v2, cmid_p, cout_p)
    return dict(w1=w1k, s1=s1, b1=sh1, w2=w2k, s2=s2, b2=sh2)


# ----------------------------------------------------------------------------
# Wrappers
# ----------------------------------------------------------------------------
def down_forward_nhwc(x_nhwc, packed, out_channels):
    B, H, W, Cin = x_nhwc.shape
    # PyTorch MaxPool2d(2) floors odd spatial dims.
    if (H % 2) or (W % 2):
        x_nhwc = x_nhwc[:, :(H // 2) * 2, :(W // 2) * 2, :]
    Hp, Wp = H // 2, W // 2
    H2 = 2 * Hp
    # Fold the W pair into the channel axis: free contiguous reshape, lets the
    # kernel do the 2x2 pool without strided loads or phase copies.
    x_r = x_nhwc.reshape(B, H2, Wp, 2 * Cin)

    w1, s1, b1 = packed["w1"], packed["s1"], packed["b1"]
    w2, s2, b2 = packed["w2"], packed["s2"], packed["b2"]
    cmid_p = w1.shape[1]
    cout_p = w2.shape[1]

    grid_spec = pltpu.PrefetchScalarGridSpec(
        num_scalar_prefetch=0,
        grid=(B,),
        in_specs=[
            pl.BlockSpec((None, H2, Wp, 2 * Cin), lambda b: (b, 0, 0, 0)),
            pl.BlockSpec((9 * Cin, cmid_p), lambda b: (0, 0)),
            pl.BlockSpec((1, cmid_p), lambda b: (0, 0)),
            pl.BlockSpec((1, cmid_p), lambda b: (0, 0)),
            pl.BlockSpec((9 * cmid_p, cout_p), lambda b: (0, 0)),
            pl.BlockSpec((1, cout_p), lambda b: (0, 0)),
            pl.BlockSpec((1, cout_p), lambda b: (0, 0)),
        ],
        out_specs=pl.BlockSpec((None, Hp, Wp, cout_p), lambda b: (b, 0, 0, 0)),
        scratch_shapes=[
            pltpu.VMEM((Hp, Wp, 9 * Cin), jnp.float32),
            pltpu.VMEM((Hp, Wp, 9 * cmid_p), jnp.float32),
        ],
    )
    out_p = pl.pallas_call(
        _down_fused_kernel,
        out_shape=jax.ShapeDtypeStruct((B, Hp, Wp, cout_p), jnp.float32),
        grid_spec=grid_spec,
        compiler_params=pltpu.CompilerParams(
            dimension_semantics=("parallel",)),  # shard batch across TCs (v7x)
    )(x_r, w1, s1, b1, w2, s2, b2)
    return out_p[..., :out_channels]


@functools.partial(jax.jit, static_argnames=("out_channels",))
def down_forward(x_nchw, packed, out_channels):
    """Forward pass of Down with the PyTorch NCHW interface."""
    x = jnp.transpose(x_nchw, (0, 2, 3, 1))      # NCHW -> NHWC
    y = down_forward_nhwc(x, packed, out_channels)
    return jnp.transpose(y, (0, 3, 1, 2))        # NHWC -> NCHW


# ----------------------------------------------------------------------------
# Deterministic parameter init + pure-XLA reference
# ----------------------------------------------------------------------------
def make_raw_params(key, in_channels, out_channels):
    mid = out_channels
    k = jax.random.split(key, 8)
    w1 = 0.1 * jax.random.normal(k[0], (mid, in_channels, 3, 3), jnp.float32)
    b1 = 0.05 * jax.random.normal(k[1], (mid,), jnp.float32)
    g1 = 1.0 + 0.1 * jax.random.normal(k[2], (mid,), jnp.float32)
    be1 = 0.1 * jax.random.normal(k[3], (mid,), jnp.float32)
    m1 = 0.1 * jax.random.normal(k[4], (mid,), jnp.float32)
    v1 = 1.0 + 0.1 * jnp.abs(jax.random.normal(k[5], (mid,), jnp.float32))

    w2 = 0.1 * jax.random.normal(k[6], (out_channels, mid, 3, 3), jnp.float32)
    b2 = 0.05 * jax.random.normal(k[7], (out_channels,), jnp.float32)
    g2 = jnp.linspace(0.9, 1.1, out_channels, dtype=jnp.float32)
    be2 = jnp.linspace(-0.05, 0.05, out_channels, dtype=jnp.float32)
    m2 = jnp.linspace(-0.1, 0.1, out_channels, dtype=jnp.float32)
    v2 = jnp.linspace(0.9, 1.2, out_channels, dtype=jnp.float32)
    return dict(conv1=(w1, b1, g1, be1, m1, v1),
                conv2=(w2, b2, g2, be2, m2, v2))


def reference_forward(x_nchw, raw):
    """Pure-JAX (XLA) reference for numerical validation."""
    def mish(x):
        return x * jnp.tanh(jax.nn.softplus(x))

    def conv_bn_mish(x, w_oihw, bias, gamma, beta, mean, var, eps=1e-5):
        y = jax.lax.conv_general_dilated(
            x, w_oihw, window_strides=(1, 1), padding="SAME",
            dimension_numbers=("NCHW", "OIHW", "NCHW"))
        y = y + bias[None, :, None, None]
        y = (y - mean[None, :, None, None]) / jnp.sqrt(
            var[None, :, None, None] + eps)
        y = y * gamma[None, :, None, None] + beta[None, :, None, None]
        return mish(y)

    B, C, H, W = x_nchw.shape
    xp = x_nchw.reshape(B, C, H // 2, 2, W // 2, 2).max(axis=(3, 5))
    xp = conv_bn_mish(xp, *raw["conv1"])
    xp = conv_bn_mish(xp, *raw["conv2"])
    return xp


if __name__ == "__main__":
    in_channels, out_channels = 4, 8
    key = jax.random.PRNGKey(0)
    kx, kp = jax.random.split(key)

    x = jax.random.normal(kx, (2, in_channels, 16, 16), jnp.float32)
    raw = make_raw_params(kp, in_channels, out_channels)
    ref = reference_forward(x, raw)

    # f32 MXU-operand path (exact module semantics).
    packed_f32 = pack_params(raw, weight_dtype=jnp.float32)
    out = jax.block_until_ready(down_forward(x, packed_f32,
                                             out_channels=out_channels))
    assert out.shape == (2, out_channels, 8, 8), out.shape
    np.testing.assert_allclose(np.asarray(out), np.asarray(ref),
                               rtol=2e-2, atol=2e-2)

    # bf16 MXU-operand path (v6e/v7x bandwidth optimization); f32 accumulate
    # and f32 elementwise epilogue, so looser tolerance only from operand cast.
    packed_bf16 = pack_params(raw, weight_dtype=jnp.bfloat16)
    out_bf16 = jax.block_until_ready(down_forward(x, packed_bf16,
                                                  out_channels=out_channels))
    np.testing.assert_allclose(np.asarray(out_bf16), np.asarray(ref),
                               rtol=1e-1, atol=5e-2)

    print("KERNEL_OK")
</pallas_src>

<mosaic_0001>
module attributes {stable_mosaic.version = 11 : i64} {
  func.func @_down_fused_kernel(%arg0: i32, %arg1: memref<1x16x8x8xf32, #tpu.memory_space<vmem>>, %arg2: memref<36x128xf32, #tpu.memory_space<vmem>>, %arg3: memref<1x128xf32, #tpu.memory_space<vmem>>, %arg4: memref<1x128xf32, #tpu.memory_space<vmem>>, %arg5: memref<1152x128xf32, #tpu.memory_space<vmem>>, %arg6: memref<1x128xf32, #tpu.memory_space<vmem>>, %arg7: memref<1x128xf32, #tpu.memory_space<vmem>>, %arg8: memref<1x8x8x128xf32, #tpu.memory_space<vmem>>, %arg9: memref<8x8x36xf32, #tpu.memory_space<vmem>>, %arg10: memref<8x8x1152xf32, #tpu.memory_space<vmem>>) attributes {dimension_semantics = [#tpu.dimension_semantics<parallel>], iteration_bounds = array<i64: 2>, scalar_prefetch = 0 : i64, scratch_operands = 2 : i64, tpu.core_type = #tpu.core_type<tc>, window_params = [{transform_indices = @transform_0, window_bounds = array<i64: 1, 16, 8, 8>}, {pipeline_mode = #tpu.pipeline_mode<synchronous>, transform_indices = @transform_1, window_bounds = array<i64: 36, 128>}, {pipeline_mode = #tpu.pipeline_mode<synchronous>, transform_indices = @transform_2, window_bounds = array<i64: 1, 128>}, {pipeline_mode = #tpu.pipeline_mode<synchronous>, transform_indices = @transform_3, window_bounds = array<i64: 1, 128>}, {pipeline_mode = #tpu.pipeline_mode<synchronous>, transform_indices = @transform_4, window_bounds = array<i64: 1152, 128>}, {pipeline_mode = #tpu.pipeline_mode<synchronous>, transform_indices = @transform_5, window_bounds = array<i64: 1, 128>}, {pipeline_mode = #tpu.pipeline_mode<synchronous>, transform_indices = @transform_6, window_bounds = array<i64: 1, 128>}, {transform_indices = @transform_7, window_bounds = array<i64: 1, 8, 8, 128>}]} {
    %c0 = arith.constant 0 : index
    %c0_0 = arith.constant 0 : index
    %c0_1 = arith.constant 0 : index
    %c0_2 = arith.constant 0 : index
    %0 = vector.load %arg1[%c0, %c0_0, %c0_1, %c0_2] : memref<1x16x8x8xf32, #tpu.memory_space<vmem>>, vector<1x16x8x8xf32>
    %1 = vector.shape_cast %0 : vector<1x16x8x8xf32> to vector<16x8x8xf32>
    %2 = vector.extract_strided_slice %1 {offsets = [0, 0, 0], sizes = [16, 8, 4], strides = [1, 1, 1]} : vector<16x8x8xf32> to vector<16x8x4xf32>
    %3 = vector.extract_strided_slice %1 {offsets = [0, 0, 4], sizes = [16, 8, 4], strides = [1, 1, 1]} : vector<16x8x8xf32> to vector<16x8x4xf32>
    %4 = arith.maximumf %2, %3 : vector<16x8x4xf32>
    %5 = vector.shape_cast %4 : vector<16x8x4xf32> to vector<8x2x8x4xf32>
    %cst = arith.constant dense<0xFF800000> : vector<8x8x4xf32>
    %6 = vector.multi_reduction <maximumf>, %5, %cst [1] : vector<8x2x8x4xf32> to vector<8x8x4xf32>
    %cst_3 = arith.constant 0.000000e+00 : f32
    %7 = vector.broadcast %cst_3 : f32 to vector<8x8x36xf32>
    %c0_4 = arith.constant 0 : index
    %c0_5 = arith.constant 0 : index
    %c0_6 = arith.constant 0 : index
    %8 = vector.load %arg9[%c0_4, %c0_5, %c0_6] : memref<8x8x36xf32, #tpu.memory_space<vmem>>, vector<8x8x36xf32>
    tpu.vector_store %arg9[%c0_4, %c0_5, %c0_6], %7 {strides = array<i32>} : memref<8x8x36xf32, #tpu.memory_space<vmem>>, vector<8x8x36xf32>,
    %9 = vector.extract_strided_slice %6 {offsets = [0, 0, 0], sizes = [7, 7, 4], strides = [1, 1, 1]} : vector<8x8x4xf32> to vector<7x7x4xf32>
    %c1 = arith.constant 1 : index
    %c1_7 = arith.constant 1 : index
    %c0_8 = arith.constant 0 : index
    %10 = vector.load %arg9[%c1, %c1_7, %c0_8] : memref<8x8x36xf32, #tpu.memory_space<vmem>>, vector<7x7x4xf32>
    tpu.vector_store %arg9[%c1, %c1_7, %c0_8], %9 {strides = array<i32>} : memref<8x8x36xf32, #tpu.memory_space<vmem>>, vector<7x7x4xf32>,
    %11 = vector.extract_strided_slice %6 {offsets = [0, 0, 0], sizes = [7, 8, 4], strides = [1, 1, 1]} : vector<8x8x4xf32> to vector<7x8x4xf32>
    %c1_9 = arith.constant 1 : index
    %c0_10 = arith.constant 0 : index
    %c4 = arith.constant 4 : index
    %12 = vector.load %arg9[%c1_9, %c0_10, %c4] : memref<8x8x36xf32, #tpu.memory_space<vmem>>, vector<7x8x4xf32>
    tpu.vector_store %arg9[%c1_9, %c0_10, %c4], %11 {strides = array<i32>} : memref<8x8x36xf32, #tpu.memory_space<vmem>>, vector<7x8x4xf32>,
    %13 = vector.extract_strided_slice %6 {offsets = [0, 1, 0], sizes = [7, 7, 4], strides = [1, 1, 1]} : vector<8x8x4xf32> to vector<7x7x4xf32>
    %c1_11 = arith.constant 1 : index
    %c0_12 = arith.constant 0 : index
    %c8 = arith.constant 8 : index
    %14 = vector.load %arg9[%c1_11, %c0_12, %c8] : memref<8x8x36xf32, #tpu.memory_space<vmem>>, vector<7x7x4xf32>
    tpu.vector_store %arg9[%c1_11, %c0_12, %c8], %13 {strides = array<i32>} : memref<8x8x36xf32, #tpu.memory_space<vmem>>, vector<7x7x4xf32>,
    %15 = vector.extract_strided_slice %6 {offsets = [0, 0, 0], sizes = [8, 7, 4], strides = [1, 1, 1]} : vector<8x8x4xf32> to vector<8x7x4xf32>
    %c0_13 = arith.constant 0 : index
    %c1_14 = arith.constant 1 : index
    %c12 = arith.constant 12 : index
    %16 = vector.load %arg9[%c0_13, %c1_14, %c12] : memref<8x8x36xf32, #tpu.memory_space<vmem>>, vector<8x7x4xf32>
    tpu.vector_store %arg9[%c0_13, %c1_14, %c12], %15 {strides = array<i32>} : memref<8x8x36xf32, #tpu.memory_space<vmem>>, vector<8x7x4xf32>,
    %c0_15 = arith.constant 0 : index
    %c0_16 = arith.constant 0 : index
    %c16 = arith.constant 16 : index
    %17 = vector.load %arg9[%c0_15, %c0_16, %c16] : memref<8x8x36xf32, #tpu.memory_space<vmem>>, vector<8x8x4xf32>
    tpu.vector_store %arg9[%c0_15, %c0_16, %c16], %6 {strides = array<i32>} : memref<8x8x36xf32, #tpu.memory_space<vmem>>, vector<8x8x4xf32>,
    %18 = vector.extract_strided_slice %6 {offsets = [0, 1, 0], sizes = [8, 7, 4], strides = [1, 1, 1]} : vector<8x8x4xf32> to vector<8x7x4xf32>
    %c0_17 = arith.constant 0 : index
    %c0_18 = arith.constant 0 : index
    %c20 = arith.constant 20 : index
    %19 = vector.load %arg9[%c0_17, %c0_18, %c20] : memref<8x8x36xf32, #tpu.memory_space<vmem>>, vector<8x7x4xf32>
    tpu.vector_store %arg9[%c0_17, %c0_18, %c20], %18 {strides = array<i32>} : memref<8x8x36xf32, #tpu.memory_space<vmem>>, vector<8x7x4xf32>,
    %20 = vector.extract_strided_slice %6 {offsets = [1, 0, 0], sizes = [7, 7, 4], strides = [1, 1, 1]} : vector<8x8x4xf32> to vector<7x7x4xf32>
    %c0_19 = arith.constant 0 : index
    %c1_20 = arith.constant 1 : index
    %c24 = arith.constant 24 : index
    %21 = vector.load %arg9[%c0_19, %c1_20, %c24] : memref<8x8x36xf32, #tpu.memory_space<vmem>>, vector<7x7x4xf32>
    tpu.vector_store %arg9[%c0_19, %c1_20, %c24], %20 {strides = array<i32>} : memref<8x8x36xf32, #tpu.memory_space<vmem>>, vector<7x7x4xf32>,
    %22 = vector.extract_strided_slice %6 {offsets = [1, 0, 0], sizes = [7, 8, 4], strides = [1, 1, 1]} : vector<8x8x4xf32> to vector<7x8x4xf32>
    %c0_21 = arith.constant 0 : index
    %c0_22 = arith.constant 0 : index
    %c28 = arith.constant 28 : index
    %23 = vector.load %arg9[%c0_21, %c0_22, %c28] : memref<8x8x36xf32, #tpu.memory_space<vmem>>, vector<7x8x4xf32>
    tpu.vector_store %arg9[%c0_21, %c0_22, %c28], %22 {strides = array<i32>} : memref<8x8x36xf32, #tpu.memory_space<vmem>>, vector<7x8x4xf32>,
    %24 = vector.extract_strided_slice %6 {offsets = [1, 1, 0], sizes = [7, 7, 4], strides = [1, 1, 1]} : vector<8x8x4xf32> to vector<7x7x4xf32>
    %c0_23 = arith.constant 0 : index
    %c0_24 = arith.constant 0 : index
    %c32 = arith.constant 32 : index
    %25 = vector.load %arg9[%c0_23, %c0_24, %c32] : memref<8x8x36xf32, #tpu.memory_space<vmem>>, vector<7x7x4xf32>
    tpu.vector_store %arg9[%c0_23, %c0_24, %c32], %24 {strides = array<i32>} : memref<8x8x36xf32, #tpu.memory_space<vmem>>, vector<7x7x4xf32>,
    %c0_25 = arith.constant 0 : index
    %c0_26 = arith.constant 0 : index
    %c0_27 = arith.constant 0 : index
    %26 = vector.load %arg9[%c0_25, %c0_26, %c0_27] : memref<8x8x36xf32, #tpu.memory_space<vmem>>, vector<8x8x36xf32>
    %27 = vector.shape_cast %26 : vector<8x8x36xf32> to vector<64x36xf32>
    %c0_28 = arith.constant 0 : index
    %c0_29 = arith.constant 0 : index
    %28 = vector.load %arg2[%c0_28, %c0_29] : memref<36x128xf32, #tpu.memory_space<vmem>>, vector<36x128xf32>
    %cst_30 = arith.constant dense<0.000000e+00> : vector<64x128xf32>
    %29 = tpu.matmul %27, %28, %cst_30 {dimension_numbers = #tpu.dot_dimension_numbers<[1], [0], [0], [1], [0, 0, 1, 1], [], []>} : vector<64x36xf32>, vector<36x128xf32>, vector<64x128xf32> -> vector<64x128xf32>
    %c0_31 = arith.constant 0 : index
    %c0_32 = arith.constant 0 : index
    %30 = vector.load %arg3[%c0_31, %c0_32] : memref<1x128xf32, #tpu.memory_space<vmem>>, vector<1x128xf32>
    %c0_33 = arith.constant 0 : index
    %c0_34 = arith.constant 0 : index
    %31 = vector.load %arg4[%c0_33, %c0_34] : memref<1x128xf32, #tpu.memory_space<vmem>>, vector<1x128xf32>
    %32 = vector.broadcast %30 : vector<1x128xf32> to vector<64x128xf32>
    %33 = arith.mulf %29, %32 : vector<64x128xf32>
    %34 = vector.broadcast %31 : vector<1x128xf32> to vector<64x128xf32>
    %35 = arith.addf %33, %34 : vector<64x128xf32>
    %cst_35 = arith.constant 2.000000e+01 : f32
    %36 = vector.broadcast %cst_35 : f32 to vector<64x128xf32>
    %37 = arith.minimumf %35, %36 : vector<64x128xf32>
    %38 = math.exp %37 : vector<64x128xf32>
    %cst_36 = arith.constant 1.000000e+00 : f32
    %39 = vector.broadcast %cst_36 : f32 to vector<64x128xf32>
    %40 = arith.addf %39, %38 : vector<64x128xf32>
    %cst_37 = arith.constant 1.000000e+00 : f32
    %41 = vector.broadcast %cst_37 : f32 to vector<64x128xf32>
    %42 = arith.addf %41, %38 : vector<64x128xf32>
    %43 = arith.mulf %40, %42 : vector<64x128xf32>
    %cst_38 = arith.constant 2.000000e+01 : f32
    %44 = vector.broadcast %cst_38 : f32 to vector<64x128xf32>
    %45 = arith.cmpf ogt, %35, %44 : vector<64x128xf32>
    %cst_39 = arith.constant 1.000000e+00 : f32
    %46 = vector.broadcast %cst_39 : f32 to vector<64x128xf32>
    %47 = arith.subf %43, %46 : vector<64x128xf32>
    %cst_40 = arith.constant 1.000000e+00 : f32
    %48 = vector.broadcast %cst_40 : f32 to vector<64x128xf32>
    %49 = arith.addf %43, %48 : vector<64x128xf32>
    %50 = tpu.reciprocal %49 {approx = true} : vector<64x128xf32> -> vector<64x128xf32>
    %51 = arith.mulf %47, %50 : vector<64x128xf32>
    %cst_41 = arith.constant 1.000000e+00 : f32
    %52 = vector.broadcast %cst_41 : f32 to vector<64x128xf32>
    %53 = arith.select %45, %52, %51 : vector<64x128xi1>, vector<64x128xf32>
    %54 = arith.mulf %35, %53 : vector<64x128xf32>
    %cst_42 = arith.constant 0.000000e+00 : f32
    %55 = vector.broadcast %cst_42 : f32 to vector<8x8x1152xf32>
    %c0_43 = arith.constant 0 : index
    %c0_44 = arith.constant 0 : index
    %c0_45 = arith.constant 0 : index
    %56 = vector.load %arg10[%c0_43, %c0_44, %c0_45] : memref<8x8x1152xf32, #tpu.memory_space<vmem>>, vector<8x8x1152xf32>
    tpu.vector_store %arg10[%c0_43, %c0_44, %c0_45], %55 {strides = array<i32>} : memref<8x8x1152xf32, #tpu.memory_space<vmem>>, vector<8x8x1152xf32>,
    %57 = vector.shape_cast %54 : vector<64x128xf32> to vector<8x8x128xf32>
    %58 = vector.extract_strided_slice %57 {offsets = [0, 0, 0], sizes = [7, 7, 128], strides = [1, 1, 1]} : vector<8x8x128xf32> to vector<7x7x128xf32>
    %c1_46 = arith.constant 1 : index
    %c1_47 = arith.constant 1 : index
    %c0_48 = arith.constant 0 : index
    %59 = vector.load %arg10[%c1_46, %c1_47, %c0_48] : memref<8x8x1152xf32, #tpu.memory_space<vmem>>, vector<7x7x128xf32>
    tpu.vector_store %arg10[%c1_46, %c1_47, %c0_48], %58 {strides = array<i32>} : memref<8x8x1152xf32, #tpu.memory_space<vmem>>, vector<7x7x128xf32>,
    %60 = vector.extract_strided_slice %57 {offsets = [0, 0, 0], sizes = [7, 8, 128], strides = [1, 1, 1]} : vector<8x8x128xf32> to vector<7x8x128xf32>
    %c1_49 = arith.constant 1 : index
    %c0_50 = arith.constant 0 : index
    %c128 = arith.constant 128 : index
    %61 = vector.load %arg10[%c1_49, %c0_50, %c128] : memref<8x8x1152xf32, #tpu.memory_space<vmem>>, vector<7x8x128xf32>
    tpu.vector_store %arg10[%c1_49, %c0_50, %c128], %60 {strides = array<i32>} : memref<8x8x1152xf32, #tpu.memory_space<vmem>>, vector<7x8x128xf32>,
    %62 = vector.extract_strided_slice %57 {offsets = [0, 1, 0], sizes = [7, 7, 128], strides = [1, 1, 1]} : vector<8x8x128xf32> to vector<7x7x128xf32>
    %c1_51 = arith.constant 1 : index
    %c0_52 = arith.constant 0 : index
    %c256 = arith.constant 256 : index
    %63 = vector.load %arg10[%c1_51, %c0_52, %c256] : memref<8x8x1152xf32, #tpu.memory_space<vmem>>, vector<7x7x128xf32>
    tpu.vector_store %arg10[%c1_51, %c0_52, %c256], %62 {strides = array<i32>} : memref<8x8x1152xf32, #tpu.memory_space<vmem>>, vector<7x7x128xf32>,
    %64 = vector.extract_strided_slice %57 {offsets = [0, 0, 0], sizes = [8, 7, 128], strides = [1, 1, 1]} : vector<8x8x128xf32> to vector<8x7x128xf32>
    %c0_53 = arith.constant 0 : index
    %c1_54 = arith.constant 1 : index
    %c384 = arith.constant 384 : index
    %65 = vector.load %arg10[%c0_53, %c1_54, %c384] : memref<8x8x1152xf32, #tpu.memory_space<vmem>>, vector<8x7x128xf32>
    tpu.vector_store %arg10[%c0_53, %c1_54, %c384], %64 {strides = array<i32>} : memref<8x8x1152xf32, #tpu.memory_space<vmem>>, vector<8x7x128xf32>,
    %c0_55 = arith.constant 0 : index
    %c0_56 = arith.constant 0 : index
    %c512 = arith.constant 512 : index
    %66 = vector.load %arg10[%c0_55, %c0_56, %c512] : memref<8x8x1152xf32, #tpu.memory_space<vmem>>, vector<8x8x128xf32>
    tpu.vector_store %arg10[%c0_55, %c0_56, %c512], %57 {strides = array<i32>} : memref<8x8x1152xf32, #tpu.memory_space<vmem>>, vector<8x8x128xf32>,
    %67 = vector.extract_strided_slice %57 {offsets = [0, 1, 0], sizes = [8, 7, 128], strides = [1, 1, 1]} : vector<8x8x128xf32> to vector<8x7x128xf32>
    %c0_57 = arith.constant 0 : index
    %c0_58 = arith.constant 0 : index
    %c640 = arith.constant 640 : index
    %68 = vector.load %arg10[%c0_57, %c0_58, %c640] : memref<8x8x1152xf32, #tpu.memory_space<vmem>>, vector<8x7x128xf32>
    tpu.vector_store %arg10[%c0_57, %c0_58, %c640], %67 {strides = array<i32>} : memref<8x8x1152xf32, #tpu.memory_space<vmem>>, vector<8x7x128xf32>,
    %69 = vector.extract_strided_slice %57 {offsets = [1, 0, 0], sizes = [7, 7, 128], strides = [1, 1, 1]} : vector<8x8x128xf32> to vector<7x7x128xf32>
    %c0_59 = arith.constant 0 : index
    %c1_60 = arith.constant 1 : index
    %c768 = arith.constant 768 : index
    %70 = vector.load %arg10[%c0_59, %c1_60, %c768] : memref<8x8x1152xf32, #tpu.memory_space<vmem>>, vector<7x7x128xf32>
    tpu.vector_store %arg10[%c0_59, %c1_60, %c768], %69 {strides = array<i32>} : memref<8x8x1152xf32, #tpu.memory_space<vmem>>, vector<7x7x128xf32>,
    %71 = vector.extract_strided_slice %57 {offsets = [1, 0, 0], sizes = [7, 8, 128], strides = [1, 1, 1]} : vector<8x8x128xf32> to vector<7x8x128xf32>
    %c0_61 = arith.constant 0 : index
    %c0_62 = arith.constant 0 : index
    %c896 = arith.constant 896 : index
    %72 = vector.load %arg10[%c0_61, %c0_62, %c896] : memref<8x8x1152xf32, #tpu.memory_space<vmem>>, vector<7x8x128xf32>
    tpu.vector_store %arg10[%c0_61, %c0_62, %c896], %71 {strides = array<i32>} : memref<8x8x1152xf32, #tpu.memory_space<vmem>>, vector<7x8x128xf32>,
    %73 = vector.extract_strided_slice %57 {offsets = [1, 1, 0], sizes = [7, 7, 128], strides = [1, 1, 1]} : vector<8x8x128xf32> to vector<7x7x128xf32>
    %c0_63 = arith.constant 0 : index
    %c0_64 = arith.constant 0 : index
    %c1024 = arith.constant 1024 : index
    %74 = vector.load %arg10[%c0_63, %c0_64, %c1024] : memref<8x8x1152xf32, #tpu.memory_space<vmem>>, vector<7x7x128xf32>
    tpu.vector_store %arg10[%c0_63, %c0_64, %c1024], %73 {strides = array<i32>} : memref<8x8x1152xf32, #tpu.memory_space<vmem>>, vector<7x7x128xf32>,
    %c0_65 = arith.constant 0 : index
    %c0_66 = arith.constant 0 : index
    %c0_67 = arith.constant 0 : index
    %75 = vector.load %arg10[%c0_65, %c0_66, %c0_67] : memref<8x8x1152xf32, #tpu.memory_space<vmem>>, vector<8x8x1152xf32>
    %76 = vector.shape_cast %75 : vector<8x8x1152xf32> to vector<64x1152xf32>
    %c0_68 = arith.constant 0 : index
    %c0_69 = arith.constant 0 : index
    %77 = vector.load %arg5[%c0_68, %c0_69] : memref<1152x128xf32, #tpu.memory_space<vmem>>, vector<1152x128xf32>
    %cst_70 = arith.constant dense<0.000000e+00> : vector<64x128xf32>
    %78 = tpu.matmul %76, %77, %cst_70 {dimension_numbers = #tpu.dot_dimension_numbers<[1], [0], [0], [1], [0, 0, 1, 1], [], []>} : vector<64x1152xf32>, vector<1152x128xf32>, vector<64x128xf32> -> vector<64x128xf32>
    %c0_71 = arith.constant 0 : index
    %c0_72 = arith.constant 0 : index
    %79 = vector.load %arg6[%c0_71, %c0_72] : memref<1x128xf32, #tpu.memory_space<vmem>>, vector<1x128xf32>
    %c0_73 = arith.constant 0 : index
    %c0_74 = arith.constant 0 : index
    %80 = vector.load %arg7[%c0_73, %c0_74] : memref<1x128xf32, #tpu.memory_space<vmem>>, vector<1x128xf32>
    %81 = vector.broadcast %79 : vector<1x128xf32> to vector<64x128xf32>
    %82 = arith.mulf %78, %81 : vector<64x128xf32>
    %83 = vector.broadcast %80 : vector<1x128xf32> to vector<64x128xf32>
    %84 = arith.addf %82, %83 : vector<64x128xf32>
    %cst_75 = arith.constant 2.000000e+01 : f32
    %85 = vector.broadcast %cst_75 : f32 to vector<64x128xf32>
    %86 = arith.minimumf %84, %85 : vector<64x128xf32>
    %87 = math.exp %86 : vector<64x128xf32>
    %cst_76 = arith.constant 1.000000e+00 : f32
    %88 = vector.broadcast %cst_76 : f32 to vector<64x128xf32>
    %89 = arith.addf %88, %87 : vector<64x128xf32>
    %cst_77 = arith.constant 1.000000e+00 : f32
    %90 = vector.broadcast %cst_77 : f32 to vector<64x128xf32>
    %91 = arith.addf %90, %87 : vector<64x128xf32>
    %92 = arith.mulf %89, %91 : vector<64x128xf32>
    %cst_78 = arith.constant 2.000000e+01 : f32
    %93 = vector.broadcast %cst_78 : f32 to vector<64x128xf32>
    %94 = arith.cmpf ogt, %84, %93 : vector<64x128xf32>
    %cst_79 = arith.constant 1.000000e+00 : f32
    %95 = vector.broadcast %cst_79 : f32 to vector<64x128xf32>
    %96 = arith.subf %92, %95 : vector<64x128xf32>
    %cst_80 = arith.constant 1.000000e+00 : f32
    %97 = vector.broadcast %cst_80 : f32 to vector<64x128xf32>
    %98 = arith.addf %92, %97 : vector<64x128xf32>
    %99 = tpu.reciprocal %98 {approx = true} : vector<64x128xf32> -> vector<64x128xf32>
    %100 = arith.mulf %96, %99 : vector<64x128xf32>
    %cst_81 = arith.constant 1.000000e+00 : f32
    %101 = vector.broadcast %cst_81 : f32 to vector<64x128xf32>
    %102 = arith.select %94, %101, %100 : vector<64x128xi1>, vector<64x128xf32>
    %103 = arith.mulf %84, %102 : vector<64x128xf32>
    %104 = vector.shape_cast %103 : vector<64x128xf32> to vector<8x8x128xf32>
    %c0_82 = arith.constant 0 : index
    %c0_83 = arith.constant 0 : index
    %c0_84 = arith.constant 0 : index
    %c0_85 = arith.constant 0 : index
    %105 = vector.load %arg8[%c0_82, %c0_83, %c0_84, %c0_85] : memref<1x8x8x128xf32, #tpu.memory_space<vmem>>, vector<1x8x8x128xf32>
    %106 = vector.shape_cast %105 : vector<1x8x8x128xf32> to vector<8x8x128xf32>
    %107 = vector.shape_cast %104 : vector<8x8x128xf32> to vector<1x8x8x128xf32>
    tpu.vector_store %arg8[%c0_82, %c0_83, %c0_84, %c0_85], %107 {strides = array<i32>} : memref<1x8x8x128xf32, #tpu.memory_space<vmem>>, vector<1x8x8x128xf32>,
    return
  }
  func.func @transform_0(%arg0: i32) -> (i32, i32, i32, i32) {
    %c0_i32 = arith.constant 0 : i32
    %c0_i32_0 = arith.constant 0 : i32
    %c0_i32_1 = arith.constant 0 : i32
    %c0_i32_2 = arith.constant 0 : i32
    return %arg0, %c0_i32, %c0_i32_0, %c0_i32_1 : i32, i32, i32, i32
  }
  func.func @transform_1(%arg0: i32) -> (i32, i32) {
    %c0_i32 = arith.constant 0 : i32
    %c0_i32_0 = arith.constant 0 : i32
    %c0_i32_1 = arith.constant 0 : i32
    return %c0_i32, %c0_i32_0 : i32, i32
  }
  func.func @transform_2(%arg0: i32) -> (i32, i32) {
    %c0_i32 = arith.constant 0 : i32
    %c0_i32_0 = arith.constant 0 : i32
    %c0_i32_1 = arith.constant 0 : i32
    return %c0_i32, %c0_i32_0 : i32, i32
  }
  func.func @transform_3(%arg0: i32) -> (i32, i32) {
    %c0_i32 = arith.constant 0 : i32
    %c0_i32_0 = arith.constant 0 : i32
    %c0_i32_1 = arith.constant 0 : i32
    return %c0_i32, %c0_i32_0 : i32, i32
  }
  func.func @transform_4(%arg0: i32) -> (i32, i32) {
    %c0_i32 = arith.constant 0 : i32
    %c0_i32_0 = arith.constant 0 : i32
    %c0_i32_1 = arith.constant 0 : i32
    return %c0_i32, %c0_i32_0 : i32, i32
  }
  func.func @transform_5(%arg0: i32) -> (i32, i32) {
    %c0_i32 = arith.constant 0 : i32
    %c0_i32_0 = arith.constant 0 : i32
    %c0_i32_1 = arith.constant 0 : i32
    return %c0_i32, %c0_i32_0 : i32, i32
  }
  func.func @transform_6(%arg0: i32) -> (i32, i32) {
    %c0_i32 = arith.constant 0 : i32
    %c0_i32_0 = arith.constant 0 : i32
    %c0_i32_1 = arith.constant 0 : i32
    return %c0_i32, %c0_i32_0 : i32, i32
  }
  func.func @transform_7(%arg0: i32) -> (i32, i32, i32, i32) {
    %c0_i32 = arith.constant 0 : i32
    %c0_i32_0 = arith.constant 0 : i32
    %c0_i32_1 = arith.constant 0 : i32
    %c0_i32_2 = arith.constant 0 : i32
    return %arg0, %c0_i32, %c0_i32_0, %c0_i32_1 : i32, i32, i32, i32
  }
}

</mosaic_0001>

<llo_original>
// kernel: down_forward.1
$region0: #{down_forward.1}
  #allocation0 [shape = 'u32[]', space=smem, size = 0x4, offset = 0x4, fixed_abs, tag = 'smem constant byte address 0x4 - core index']
  #allocation1 [shape = 'u32[144,128]{1,0:T(1,128)}', space=vmem, size = 0x12000, scoped, tag = 'internal scratch']
  #allocation2 [shape = 'f32[8,8,36]{2,1,0:T(8,128)}', space=vmem, size = 0x8000, scoped, tag = 'scratch operand']
  #allocation3 [shape = 'f32[8,8,1152]{2,1,0:T(8,128)}', space=vmem, size = 0x48000, scoped, tag = 'scratch operand']
  %s0 = inlined_call_operand.vmem [shape: f32[2,16,8,8], index: 0, kind: input, shape index: {}]
  %s1 = inlined_call_operand.vmem [shape: f32[36,128], index: 1, kind: input, shape index: {}]
  %s2 = inlined_call_operand.vmem [shape: f32[1,128], index: 2, kind: input, shape index: {}]
  %s3 = inlined_call_operand.vmem [shape: f32[1,128], index: 3, kind: input, shape index: {}]
  %s4 = inlined_call_operand.hbm [shape: f32[1152,128], index: 4, kind: input, shape index: {}]
  %s5 = inlined_call_operand.vmem [shape: f32[1,128], index: 5, kind: input, shape index: {}]
  %s6 = inlined_call_operand.vmem [shape: f32[1,128], index: 6, kind: input, shape index: {}]
  %s7 = inlined_call_operand.vmem [shape: f32[2,8,8,128], index: 7, kind: output, shape index: {}]
  %s8 = sld [smem:[#allocation0]]
  $region65: #{down_forward.1} parent=0
    _
  %s10 = ssub.s32 1, %s8
  %s11 = scalar_select 0, %s10, %s8
  $region1: #{down_forward.1} parent=0
    #allocation4 [shape = 'u8[589824]{0}', space=vmem, size = 0x90000, scoped, tag = 'input window, operand 4, single buffered']
    #allocation5 [shape = 's32[2]{0}', space=sflag, size = 0x8, scoped, tag = 'scoped memory for down_forward.1']
    %12 = vsyncpa [#allocation5], 0
    loop: start=0, step=1, limit=4
    $region2: #{down_forward.1} parent=1 // loop_pre_header
      _
    $region3: #{down_forward.1} parent=1 // loop_header
      %s14 = sphi 0, %s18
      %p15 = scmp.ge.s32.totalorder %s14, 4
      %s24 = sphi 0, %s26
      %s27 = sphi 0, %s24
      %s28 = sphi 0, %s27
      %s44 = sphi 0, %s28
      %s48 = sphi 0, %s48
      %s50 = sphi 0, %s48
      %s51 = sphi 0, %s50
      %s65 = sphi 0, %s51
      %s69 = sphi 0, %s69
      %s71 = sphi 0, %s69
      %s72 = sphi 0, %s71
      %s86 = sphi 0, %s72
      %s90 = sphi 0, %s90
      %s92 = sphi 0, %s90
      %s93 = sphi 0, %s92
      %s107 = sphi 0, %s93
      %s111 = sphi 0, %s111
      %s113 = sphi 0, %s111
      %s114 = sphi 0, %s113
      %s128 = sphi 0, %s114
      %s132 = sphi 0, %s132
      %s134 = sphi 0, %s132
      %s135 = sphi 0, %s134
      %s149 = sphi 0, %s135
      %s153 = sphi 0, %s153
      %s155 = sphi 0, %s153
      %s156 = sphi 0, %s155
      %s170 = sphi 0, %s156
      %s176 = sphi 0, %s178
      %s179 = sphi 0, %s176
      %s180 = sphi 0, %s179
      %s196 = sphi 0, %s180
    $region4: #{down_forward.1} parent=1 // loop_header_branch
      %17 = sbr.rel (%p15) target = $region8
    $region5: #{down_forward.1} parent=1 // loop_body
      %s19 = ssub.s32 %s14, 1
      %s20 = ssub.s32 %s14, 2
      %s21 = sadd.s32 %s14, 1
      %s22 = ssub.s32 %s14, %s21
      %p23 = scmp.eq.s32.totalorder %s22, 0
      %s25 = sadd.s32 %s24, 1
      %s26 = scalar_select %p23, %s24, %s25
      %p29 = pneg %p23
      %p30 = scmp.eq.s32.totalorder %s14, 1
      %p31 = por %p29, %p30
      %p32 = scmp.ne.s32.totalorder %s24, %s27
      %p33 = scmp.eq.s32.totalorder %s14, 0
      %p34 = por %p32, %p33
      %p35 = scmp.ne.s32.totalorder %s24, %s27
      %p36 = scmp.eq.s32.totalorder %s19, 1
      %p37 = por %p35, %p36
      %p38 = scmp.ne.s32.totalorder %s27, %s28
      %p39 = scmp.eq.s32.totalorder %s19, 0
      %p40 = por %p38, %p39
      %p41 = scmp.ne.s32.totalorder %s27, %s28
      %p42 = scmp.eq.s32.totalorder %s20, 1
      %p43 = por %p41, %p42
      %p45 = scmp.ne.s32.totalorder %s28, %s44
      %p46 = scmp.eq.s32.totalorder %s20, 0
      %p47 = por %p45, %p46
      %s49 = sadd.s32 %s48, 1
      %p52 = scmp.eq.s32.totalorder %s14, 1
      %p53 = scmp.ne.s32.totalorder %s48, %s50
      %p54 = scmp.eq.s32.totalorder %s14, 0
      %p55 = por %p53, %p54
      %p56 = scmp.ne.s32.totalorder %s48, %s50
      %p57 = scmp.eq.s32.totalorder %s19, 1
      %p58 = por %p56, %p57
      %p59 = scmp.ne.s32.totalorder %s50, %s51
      %p60 = scmp.eq.s32.totalorder %s19, 0
      %p61 = por %p59, %p60
      %p62 = scmp.ne.s32.totalorder %s50, %s51
      %p63 = scmp.eq.s32.totalorder %s20, 1
      %p64 = por %p62, %p63
      %p66 = scmp.ne.s32.totalorder %s51, %s65
      %p67 = scmp.eq.s32.totalorder %s20, 0
      %p68 = por %p66, %p67
      %s70 = sadd.s32 %s69, 1
      %p73 = scmp.eq.s32.totalorder %s14, 1
      %p74 = scmp.ne.s32.totalorder %s69, %s71
      %p75 = scmp.eq.s32.totalorder %s14, 0
      %p76 = por %p74, %p75
      %p77 = scmp.ne.s32.totalorder %s69, %s71
      %p78 = scmp.eq.s32.totalorder %s19, 1
      %p79 = por %p77, %p78
      %p80 = scmp.ne.s32.totalorder %s71, %s72
      %p81 = scmp.eq.s32.totalorder %s19, 0
      %p82 = por %p80, %p81
      %p83 = scmp.ne.s32.totalorder %s71, %s72
      %p84 = scmp.eq.s32.totalorder %s20, 1
      %p85 = por %p83, %p84
      %p87 = scmp.ne.s32.totalorder %s72, %s86
      %p88 = scmp.eq.s32.totalorder %s20, 0
      %p89 = por %p87, %p88
      %s91 = sadd.s32 %s90, 1
      %p94 = scmp.eq.s32.totalorder %s14, 1
      %p95 = scmp.ne.s32.totalorder %s90, %s92
      %p96 = scmp.eq.s32.totalorder %s14, 0
      %p97 = por %p95, %p96
      %p98 = scmp.ne.s32.totalorder %s90, %s92
      %p99 = scmp.eq.s32.totalorder %s19, 1
      %p100 = por %p98, %p99
      %p101 = scmp.ne.s32.totalorder %s92, %s93
      %p102 = scmp.eq.s32.totalorder %s19, 0
      %p103 = por %p101, %p102
      %p104 = scmp.ne.s32.totalorder %s92, %s93
      %p105 = scmp.eq.s32.totalorder %s20, 1
      %p106 = por %p104, %p105
      %p108 = scmp.ne.s32.totalorder %s93, %s107
      %p109 = scmp.eq.s32.totalorder %s20, 0
      %p110 = por %p108, %p109
      %s112 = sadd.s32 %s111, 1
      %p115 = scmp.eq.s32.totalorder %s14, 1
      %p116 = scmp.ne.s32.totalorder %s111, %s113
      %p117 = scmp.eq.s32.totalorder %s14, 0
      %p118 = por %p116, %p117
      %p119 = scmp.ne.s32.totalorder %s111, %s113
      %p120 = scmp.eq.s32.totalorder %s19, 1
      %p121 = por %p119, %p120
      %p122 = scmp.ne.s32.totalorder %s113, %s114
      %p123 = scmp.eq.s32.totalorder %s19, 0
      %p124 = por %p122, %p123
      %p125 = scmp.ne.s32.totalorder %s113, %s114
      %p126 = scmp.eq.s32.totalorder %s20, 1
      %p127 = por %p125, %p126
      %p129 = scmp.ne.s32.totalorder %s114, %s128
      %p130 = scmp.eq.s32.totalorder %s20, 0
      %p131 = por %p129, %p130
      %s133 = sadd.s32 %s132, 1
      %p136 = scmp.eq.s32.totalorder %s14, 1
      %p137 = scmp.ne.s32.totalorder %s132, %s134
      %p138 = scmp.eq.s32.totalorder %s14, 0
      %p139 = por %p137, %p138
      %p140 = scmp.ne.s32.totalorder %s132, %s134
      %p141 = scmp.eq.s32.totalorder %s19, 1
      %p142 = por %p140, %p141
      %p143 = scmp.ne.s32.totalorder %s134, %s135
      %p144 = scmp.eq.s32.totalorder %s19, 0
      %p145 = por %p143, %p144
      %p146 = scmp.ne.s32.totalorder %s134, %s135
      %p147 = scmp.eq.s32.totalorder %s20, 1
      %p148 = por %p146, %p147
      %p150 = scmp.ne.s32.totalorder %s135, %s149
      %p151 = scmp.eq.s32.totalorder %s20, 0
      %p152 = por %p150, %p151
      %s154 = sadd.s32 %s153, 1
      %p157 = scmp.eq.s32.totalorder %s14, 1
      %p158 = scmp.ne.s32.totalorder %s153, %s155
      %p159 = scmp.eq.s32.totalorder %s14, 0
      %p160 = por %p158, %p159
      %p161 = scmp.ne.s32.totalorder %s153, %s155
      %p162 = scmp.eq.s32.totalorder %s19, 1
      %p163 = por %p161, %p162
      %p164 = scmp.ne.s32.totalorder %s155, %s156
      %p165 = scmp.eq.s32.totalorder %s19, 0
      %p166 = por %p164, %p165
      %p167 = scmp.ne.s32.totalorder %s155, %s156
      %p168 = scmp.eq.s32.totalorder %s20, 1
      %p169 = por %p167, %p168
      %p171 = scmp.ne.s32.totalorder %s156, %s170
      %p172 = scmp.eq.s32.totalorder %s20, 0
      %p173 = por %p171, %p172
      %s174 = ssub.s32 %s14, %s21
      %p175 = scmp.eq.s32.totalorder %s174, 0
      %s177 = sadd.s32 %s176, 1
      %s178 = scalar_select %p175, %s176, %s177
      %p181 = pneg %p175
      %p182 = scmp.eq.s32.totalorder %s14, 1
      %p183 = por %p181, %p182
      %p184 = scmp.ne.s32.totalorder %s176, %s179
      %p185 = scmp.eq.s32.totalorder %s14, 0
      %p186 = por %p184, %p185
      %p187 = scmp.ne.s32.totalorder %s176, %s179
      %p188 = scmp.eq.s32.totalorder %s19, 1
      %p189 = por %p187, %p188
      %p190 = scmp.ne.s32.totalorder %s179, %s180
      %p191 = scmp.eq.s32.totalorder %s19, 0
      %p192 = por %p190, %p191
      %p193 = scmp.ne.s32.totalorder %s179, %s180
      %p194 = scmp.eq.s32.totalorder %s20, 1
      %p195 = por %p193, %p194
      %p197 = scmp.ne.s32.totalorder %s180, %s196
      %p198 = scmp.eq.s32.totalorder %s20, 0
      %p199 = por %p197, %p198
      %p200 = scmp.le.s32.totalorder 1, %s14
      %p201 = scmp.lt.s32.totalorder %s14, 3
      %p202 = pnand %p200, %p201
      %p203 = pneg %p202
      // Predicated region
      $region9: #{down_forward.1} parent=5 // pred_check
        _
      $region10: #{down_forward.1} parent=5 // pred_check_branch
        %205 = sbr.rel (%p202) target = $region12
      $region11: #{down_forward.1} parent=5 // pred_region
        %s206 = ssub.s32 %s14, 1
        // Predicated region
        $region13: #{down_forward.1} parent=11 // pred_check
          %p207 = pneg %p61
        $region14: #{down_forward.1} parent=11 // pred_check_branch
          %209 = sbr.rel (%p207) target = $region16
        $region15: #{down_forward.1} parent=11 // pred_region
          _
        $region16: #{down_forward.1} parent=11 // pred_fallthru
          _
        // Predicated region
        $region17: #{down_forward.1} parent=11 // pred_check
          %p210 = pneg %p82
        $region18: #{down_forward.1} parent=11 // pred_check_branch
          %212 = sbr.rel (%p210) target = $region20
        $region19: #{down_forward.1} parent=11 // pred_region
          _
        $region20: #{down_forward.1} parent=11 // pred_fallthru
          _
        // Predicated region
        $region21: #{down_forward.1} parent=11 // pred_check
          %p213 = pneg %p103
        $region22: #{down_forward.1} parent=11 // pred_check_branch
          %215 = sbr.rel (%p213) target = $region24
        $region23: #{down_forward.1} parent=11 // pred_region
          _
        $region24: #{down_forward.1} parent=11 // pred_fallthru
          _
        // Predicated region
        $region25: #{down_forward.1} parent=11 // pred_check
          %p216 = pneg %p124
        $region26: #{down_forward.1} parent=11 // pred_check_branch
          %218 = sbr.rel (%p216) target = $region28
        $region27: #{down_forward.1} parent=11 // pred_region
          %s220 = ssub.s32 18432, 18432
          %221 = vsyncadd [#allocation5], %s220
          %s222 = sshll.u32 [#allocation4], 4
          %s223 = int_to_ptr.vmem [resolvable:$true] %s222
          %228 = dma.hbm_to_vmem [thread:$0]  %s4, 18432, %s223, [#allocation5], 128, 128, 8
        $region28: #{down_forward.1} parent=11 // pred_fallthru
          _
        // Predicated region
        $region29: #{down_forward.1} parent=11 // pred_check
          %p229 = pneg %p145
        $region30: #{down_forward.1} parent=11 // pred_check_branch
          %231 = sbr.rel (%p229) target = $region32
        $region31: #{down_forward.1} parent=11 // pred_region
          _
        $region32: #{down_forward.1} parent=11 // pred_fallthru
          _
        // Predicated region
        $region33: #{down_forward.1} parent=11 // pred_check
          %p232 = pneg %p166
        $region34: #{down_forward.1} parent=11 // pred_check_branch
          %234 = sbr.rel (%p232) target = $region36
        $region35: #{down_forward.1} parent=11 // pred_region
          _
        $region36: #{down_forward.1} parent=11 // pred_fallthru
          _
      $region12: #{down_forward.1} parent=5 // pred_fallthru
        _
      %p235 = scmp.lt.s32.totalorder %s14, 2
      // Predicated region
      $region37: #{down_forward.1} parent=5 // pred_check
        %p236 = pneg %p235
      $region38: #{down_forward.1} parent=5 // pred_check_branch
        %238 = sbr.rel (%p236) target = $region40
      $region39: #{down_forward.1} parent=5 // pred_region
        // Predicated region
        $region41: #{down_forward.1} parent=39 // pred_check
          %p239 = pneg %p34
        $region42: #{down_forward.1} parent=39 // pred_check_branch
          %241 = sbr.rel (%p239) target = $region44
        $region43: #{down_forward.1} parent=39 // pred_region
          %p242 = scmp.lt.s32.totalorder %s14, 1
          %s243 = scalar_select %p242, %s14, 1
          %s244 = smul.addr %s243, 16
          %s245 = smul.addr %s244, 8
          %s246 = scalar_lea.vmem %s0, %s245
        $region44: #{down_forward.1} parent=39 // pred_fallthru
          _
      $region40: #{down_forward.1} parent=5 // pred_fallthru
        _
      %p247 = scmp.le.s32.totalorder 1, %s14
      %p248 = scmp.lt.s32.totalorder %s14, 3
      %p249 = pnand %p247, %p248
      %p250 = pneg %p249
      // Predicated region
      $region45: #{down_forward.1} parent=5 // pred_check
        _
      $region46: #{down_forward.1} parent=5 // pred_check_branch
        %252 = sbr.rel (%p249) target = $region48
      $region47: #{down_forward.1} parent=5 // pred_region
        %s253 = ssub.s32 %s14, 1
        // Predicated region
        $region49: #{down_forward.1} parent=47 // pred_check
          %p254 = pneg %p124
        $region50: #{down_forward.1} parent=47 // pred_check_branch
          %256 = sbr.rel (%p254) target = $region52
        $region51: #{down_forward.1} parent=47 // pred_region
          %257 = dma.done [#allocation5], 18432
        $region52: #{down_forward.1} parent=47 // pred_fallthru
          _
        %p258 = scmp.lt.s32.totalorder %s19, 1
        %s259 = scalar_select %p258, %s19, 1
        %s260 = smul.addr %s259, 16
        %s261 = smul.addr %s260, 8
        %s262 = scalar_lea.vmem %s0, %s261
        %p263 = pneg %p40
        %p264 = pneg %p37
        %p265 = pneg %p61
        %p266 = pneg %p58
        %p267 = pneg %p82
        %p268 = pneg %p79
        %p269 = pneg %p103
        %p270 = pneg %p100
        %p271 = pneg %p124
        %p272 = pneg %p121
        %p273 = pneg %p145
        %p274 = pneg %p142
        %p275 = pneg %p166
        %p276 = pneg %p163
        %p277 = pneg %p192
        %p278 = pneg %p189
        %p279 = scmp.lt.s32.totalorder %s19, 1
        %s280 = scalar_select %p279, %s19, 1
        %s281 = smul.addr %s280, 8
        %s282 = smul.addr %s281, 8
        %s283 = scalar_lea.vmem %s7, %s282
        %p284 = scmp.lt.s32.totalorder %s19, 1
        %s285 = scalar_select %p284, %s19, 1
        %s286 = smul.addr %s285, 16
        %s287 = smul.addr %s286, 8
        %s288 = scalar_lea.vmem %s0, %s287
        %p289 = scmp.lt.s32.totalorder %s19, 1
        %s290 = scalar_select %p289, %s19, 1
        %s291 = smul.addr %s290, 8
        %s292 = smul.addr %s291, 8
        %s293 = scalar_lea.vmem %s7, %s292
        %v294 = vld [vmem:[%s288] sm:$0xff]
        %v295 = vld [vmem:[%s288 + $0x8] sm:$0xff]
        %v296 = vld [vmem:[%s288 + $0x10] sm:$0xff]
        %v297 = vld [vmem:[%s288 + $0x18] sm:$0xff]
        %v298 = vld [vmem:[%s288 + $0x20] sm:$0xff]
        %v299 = vld [vmem:[%s288 + $0x28] sm:$0xff]
        %v300 = vld [vmem:[%s288 + $0x30] sm:$0xff]
        %v301 = vld [vmem:[%s288 + $0x38] sm:$0xff]
        %v302 = vld [vmem:[%s288 + $0x40] sm:$0xff]
        %v303 = vld [vmem:[%s288 + $0x48] sm:$0xff]
        %v304 = vld [vmem:[%s288 + $0x50] sm:$0xff]
        %v305 = vld [vmem:[%s288 + $0x58] sm:$0xff]
        %v306 = vld [vmem:[%s288 + $0x60] sm:$0xff]
        %v307 = vld [vmem:[%s288 + $0x68] sm:$0xff]
        %v308 = vld [vmem:[%s288 + $0x70] sm:$0xff]
        %v309 = vld [vmem:[%s288 + $0x78] sm:$0xff]
        %326 = vrot.lane.b32.xlu0 %v294, 124
        %v327 = vpop.permute.xlu0 %326
        %328 = vrot.lane.b32.xlu0 %v295, 124
        %v329 = vpop.permute.xlu0 %328
        %330 = vrot.lane.b32.xlu0 %v296, 124
        %v331 = vpop.permute.xlu0 %330
        %332 = vrot.lane.b32.xlu0 %v297, 124
        %v333 = vpop.permute.xlu0 %332
        %334 = vrot.lane.b32.xlu0 %v298, 124
        %v335 = vpop.permute.xlu0 %334
        %336 = vrot.lane.b32.xlu0 %v299, 124
        %v337 = vpop.permute.xlu0 %336
        %338 = vrot.lane.b32.xlu0 %v300, 124
        %v339 = vpop.permute.xlu0 %338
        %340 = vrot.lane.b32.xlu0 %v301, 124
        %v341 = vpop.permute.xlu0 %340
        %342 = vrot.lane.b32.xlu0 %v302, 124
        %v343 = vpop.permute.xlu0 %342
        %344 = vrot.lane.b32.xlu0 %v303, 124
        %v345 = vpop.permute.xlu0 %344
        %346 = vrot.lane.b32.xlu0 %v304, 124
        %v347 = vpop.permute.xlu0 %346
        %348 = vrot.lane.b32.xlu0 %v305, 124
        %v349 = vpop.permute.xlu0 %348
        %350 = vrot.lane.b32.xlu0 %v306, 124
        %v351 = vpop.permute.xlu0 %350
        %352 = vrot.lane.b32.xlu0 %v307, 124
        %v353 = vpop.permute.xlu0 %352
        %354 = vrot.lane.b32.xlu0 %v308, 124
        %v355 = vpop.permute.xlu0 %354
        %356 = vrot.lane.b32.xlu0 %v309, 124
        %v357 = vpop.permute.xlu0 %356
        %v374 = vmax.f32 %v294, %v327
        %v375 = vmax.f32 %v295, %v329
        %v376 = vmax.f32 %v296, %v331
        %v377 = vmax.f32 %v297, %v333
        %v378 = vmax.f32 %v298, %v335
        %v379 = vmax.f32 %v299, %v337
        %v380 = vmax.f32 %v300, %v339
        %v381 = vmax.f32 %v301, %v341
        %v382 = vmax.f32 %v302, %v343
        %v383 = vmax.f32 %v303, %v345
        %v384 = vmax.f32 %v304, %v347
        %v385 = vmax.f32 %v305, %v349
        %v386 = vmax.f32 %v306, %v351
        %v387 = vmax.f32 %v307, %v353
        %v388 = vmax.f32 %v308, %v355
        %v389 = vmax.f32 %v309, %v357
        %vm390 = vcmask 31744
        %v391 = vsel %vm390, %v374, -inf
        %v392 = vsel %vm390, %v375, -inf
        %v393 = vmax.f32 %v391, %v392
        %v394 = vsel %vm390, %v376, -inf
        %v395 = vsel %vm390, %v377, -inf
        %v396 = vmax.f32 %v394, %v395
        %v397 = vsel %vm390, %v378, -inf
        %v398 = vsel %vm390, %v379, -inf
        %v399 = vmax.f32 %v397, %v398
        %v400 = vsel %vm390, %v380, -inf
        %v401 = vsel %vm390, %v381, -inf
        %v402 = vmax.f32 %v400, %v401
        %v403 = vsel %vm390, %v382, -inf
        %v404 = vsel %vm390, %v383, -inf
        %v405 = vmax.f32 %v403, %v404
        %v406 = vsel %vm390, %v384, -inf
        %v407 = vsel %vm390, %v385, -inf
        %v408 = vmax.f32 %v406, %v407
        %v409 = vsel %vm390, %v386, -inf
        %v410 = vsel %vm390, %v387, -inf
        %v411 = vmax.f32 %v409, %v410
        %v412 = vsel %vm390, %v388, -inf
        %v413 = vsel %vm390, %v389, -inf
        %v414 = vmax.f32 %v412, %v413
        %vm415 = vcmask 293888
        %416 = vst.msk [vmem:[#allocation2] sm:$0xff] %vm415, 0.0
        %417 = vst.msk [vmem:[#allocation2 + $0x8] sm:$0xff] %vm415, 0.0
        %418 = vst.msk [vmem:[#allocation2 + $0x10] sm:$0xff] %vm415, 0.0
        %419 = vst.msk [vmem:[#allocation2 + $0x18] sm:$0xff] %vm415, 0.0
        %420 = vst.msk [vmem:[#allocation2 + $0x20] sm:$0xff] %vm415, 0.0
        %421 = vst.msk [vmem:[#allocation2 + $0x28] sm:$0xff] %vm415, 0.0
        %422 = vst.msk [vmem:[#allocation2 + $0x30] sm:$0xff] %vm415, 0.0
        %423 = vst.msk [vmem:[#allocation2 + $0x38] sm:$0xff] %vm415, 0.0
        %s424 = scalar_lea.vmem [#allocation2], 8
        %vm425 = vcmask 30720
        %426 = vst.msk [vmem:[%s424 + $0x1] sm:$0x7f] %vm425, %v393
        %427 = vst.msk [vmem:[%s424 + $0x9] sm:$0x7f] %vm425, %v396
        %428 = vst.msk [vmem:[%s424 + $0x11] sm:$0x7f] %vm425, %v399
        %429 = vst.msk [vmem:[%s424 + $0x19] sm:$0x7f] %vm425, %v402
        %430 = vst.msk [vmem:[%s424 + $0x21] sm:$0x7f] %vm425, %v405
        %431 = vst.msk [vmem:[%s424 + $0x29] sm:$0x7f] %vm425, %v408
        %432 = vst.msk [vmem:[%s424 + $0x31] sm:$0x7f] %vm425, %v411
        %440 = vrot.lane.b32.xlu0 %v393, 4
        %v441 = vpop.permute.xlu0 %440
        %442 = vrot.lane.b32.xlu0 %v396, 4
        %v443 = vpop.permute.xlu0 %442
        %444 = vrot.lane.b32.xlu0 %v399, 4
        %v445 = vpop.permute.xlu0 %444
        %446 = vrot.lane.b32.xlu0 %v402, 4
        %v447 = vpop.permute.xlu0 %446
        %448 = vrot.lane.b32.xlu0 %v405, 4
        %v449 = vpop.permute.xlu0 %448
        %450 = vrot.lane.b32.xlu0 %v408, 4
        %v451 = vpop.permute.xlu0 %450
        %452 = vrot.lane.b32.xlu0 %v411, 4
        %v453 = vpop.permute.xlu0 %452
        %vm461 = vcmask 64544
        %462 = vst.msk [vmem:[%s424] sm:$0xff] %vm461, %v441
        %463 = vst.msk [vmem:[%s424 + $0x8] sm:$0xff] %vm461, %v443
        %464 = vst.msk [vmem:[%s424 + $0x10] sm:$0xff] %vm461, %v445
        %465 = vst.msk [vmem:[%s424 + $0x18] sm:$0xff] %vm461, %v447
        %466 = vst.msk [vmem:[%s424 + $0x20] sm:$0xff] %vm461, %v449
        %467 = vst.msk [vmem:[%s424 + $0x28] sm:$0xff] %vm461, %v451
        %468 = vst.msk [vmem:[%s424 + $0x30] sm:$0xff] %vm461, %v453
        %469 = vrot.lane.b32.xlu0 %v393, 8
        %v470 = vpop.permute.xlu0 %469
        %471 = vrot.lane.b32.xlu0 %v396, 8
        %v472 = vpop.permute.xlu0 %471
        %473 = vrot.lane.b32.xlu0 %v399, 8
        %v474 = vpop.permute.xlu0 %473
        %475 = vrot.lane.b32.xlu0 %v402, 8
        %v476 = vpop.permute.xlu0 %475
        %477 = vrot.lane.b32.xlu0 %v405, 8
        %v478 = vpop.permute.xlu0 %477
        %479 = vrot.lane.b32.xlu0 %v408, 8
        %v480 = vpop.permute.xlu0 %479
        %481 = vrot.lane.b32.xlu0 %v411, 8
        %v482 = vpop.permute.xlu0 %481
        %vm490 = vcmask 97345
        %491 = vst.msk [vmem:[%s424 - $0x1] sm:$0xfe] %vm490, %v470
        %492 = vst.msk [vmem:[%s424 + $0x7] sm:$0xfe] %vm490, %v472
        %493 = vst.msk [vmem:[%s424 + $0xf] sm:$0xfe] %vm490, %v474
        %494 = vst.msk [vmem:[%s424 + $0x17] sm:$0xfe] %vm490, %v476
        %495 = vst.msk [vmem:[%s424 + $0x1f] sm:$0xfe] %vm490, %v478
        %496 = vst.msk [vmem:[%s424 + $0x27] sm:$0xfe] %vm490, %v480
        %497 = vst.msk [vmem:[%s424 + $0x2f] sm:$0xfe] %vm490, %v482
        %499 = vrot.lane.b32.xlu0 %v393, 12
        %v500 = vpop.permute.xlu0 %499
        %501 = vrot.lane.b32.xlu0 %v396, 12
        %v502 = vpop.permute.xlu0 %501
        %503 = vrot.lane.b32.xlu0 %v399, 12
        %v504 = vpop.permute.xlu0 %503
        %505 = vrot.lane.b32.xlu0 %v402, 12
        %v506 = vpop.permute.xlu0 %505
        %507 = vrot.lane.b32.xlu0 %v405, 12
        %v508 = vpop.permute.xlu0 %507
        %509 = vrot.lane.b32.xlu0 %v408, 12
        %v510 = vpop.permute.xlu0 %509
        %511 = vrot.lane.b32.xlu0 %v411, 12
        %v512 = vpop.permute.xlu0 %511
        %513 = vrot.lane.b32.xlu0 %v414, 12
        %v514 = vpop.permute.xlu0 %513
        %vm523 = vcmask 129120
        %524 = vst.msk [vmem:[#allocation2 + $0x1] sm:$0x7f] %vm523, %v500
        %525 = vst.msk [vmem:[#allocation2 + $0x9] sm:$0x7f] %vm523, %v502
        %526 = vst.msk [vmem:[#allocation2 + $0x11] sm:$0x7f] %vm523, %v504
        %527 = vst.msk [vmem:[#allocation2 + $0x19] sm:$0x7f] %vm523, %v506
        %528 = vst.msk [vmem:[#allocation2 + $0x21] sm:$0x7f] %vm523, %v508
        %529 = vst.msk [vmem:[#allocation2 + $0x29] sm:$0x7f] %vm523, %v510
        %530 = vst.msk [vmem:[#allocation2 + $0x31] sm:$0x7f] %vm523, %v512
        %531 = vst.msk [vmem:[#allocation2 + $0x39] sm:$0x7f] %vm523, %v514
        %532 = vrot.lane.b32.xlu0 %v393, 16
        %v533 = vpop.permute.xlu0 %532
        %534 = vrot.lane.b32.xlu0 %v396, 16
        %v535 = vpop.permute.xlu0 %534
        %536 = vrot.lane.b32.xlu0 %v399, 16
        %v537 = vpop.permute.xlu0 %536
        %538 = vrot.lane.b32.xlu0 %v402, 16
        %v539 = vpop.permute.xlu0 %538
        %540 = vrot.lane.b32.xlu0 %v405, 16
        %v541 = vpop.permute.xlu0 %540
        %542 = vrot.lane.b32.xlu0 %v408, 16
        %v543 = vpop.permute.xlu0 %542
        %544 = vrot.lane.b32.xlu0 %v411, 16
        %v545 = vpop.permute.xlu0 %544
        %546 = vrot.lane.b32.xlu0 %v414, 16
        %v547 = vpop.permute.xlu0 %546
        %vm556 = vcmask 162944
        %557 = vst.msk [vmem:[#allocation2] sm:$0xff] %vm556, %v533
        %558 = vst.msk [vmem:[#allocation2 + $0x8] sm:$0xff] %vm556, %v535
        %559 = vst.msk [vmem:[#allocation2 + $0x10] sm:$0xff] %vm556, %v537
        %560 = vst.msk [vmem:[#allocation2 + $0x18] sm:$0xff] %vm556, %v539
        %561 = vst.msk [vmem:[#allocation2 + $0x20] sm:$0xff] %vm556, %v541
        %562 = vst.msk [vmem:[#allocation2 + $0x28] sm:$0xff] %vm556, %v543
        %563 = vst.msk [vmem:[#allocation2 + $0x30] sm:$0xff] %vm556, %v545
        %564 = vst.msk [vmem:[#allocation2 + $0x38] sm:$0xff] %vm556, %v547
        %565 = vrot.lane.b32.xlu0 %v393, 20
        %v566 = vpop.permute.xlu0 %565
        %567 = vrot.lane.b32.xlu0 %v396, 20
        %v568 = vpop.permute.xlu0 %567
        %569 = vrot.lane.b32.xlu0 %v399, 20
        %v570 = vpop.permute.xlu0 %569
        %571 = vrot.lane.b32.xlu0 %v402, 20
        %v572 = vpop.permute.xlu0 %571
        %573 = vrot.lane.b32.xlu0 %v405, 20
        %v574 = vpop.permute.xlu0 %573
        %575 = vrot.lane.b32.xlu0 %v408, 20
        %v576 = vpop.permute.xlu0 %575
        %577 = vrot.lane.b32.xlu0 %v411, 20
        %v578 = vpop.permute.xlu0 %577
        %579 = vrot.lane.b32.xlu0 %v414, 20
        %v580 = vpop.permute.xlu0 %579
        %vm589 = vcmask 195745
        %590 = vst.msk [vmem:[#allocation2 - $0x1] sm:$0xfe] %vm589, %v566
        %591 = vst.msk [vmem:[#allocation2 + $0x7] sm:$0xfe] %vm589, %v568
        %592 = vst.msk [vmem:[#allocation2 + $0xf] sm:$0xfe] %vm589, %v570
        %593 = vst.msk [vmem:[#allocation2 + $0x17] sm:$0xfe] %vm589, %v572
        %594 = vst.msk [vmem:[#allocation2 + $0x1f] sm:$0xfe] %vm589, %v574
        %595 = vst.msk [vmem:[#allocation2 + $0x27] sm:$0xfe] %vm589, %v576
        %596 = vst.msk [vmem:[#allocation2 + $0x2f] sm:$0xfe] %vm589, %v578
        %597 = vst.msk [vmem:[#allocation2 + $0x37] sm:$0xfe] %vm589, %v580
        %598 = vrot.lane.b32.xlu0 %v396, 24
        %v599 = vpop.permute.xlu0 %598
        %600 = vrot.lane.b32.xlu0 %v399, 24
        %v601 = vpop.permute.xlu0 %600
        %602 = vrot.lane.b32.xlu0 %v402, 24
        %v603 = vpop.permute.xlu0 %602
        %604 = vrot.lane.b32.xlu0 %v405, 24
        %v605 = vpop.permute.xlu0 %604
        %606 = vrot.lane.b32.xlu0 %v408, 24
        %v607 = vpop.permute.xlu0 %606
        %608 = vrot.lane.b32.xlu0 %v411, 24
        %v609 = vpop.permute.xlu0 %608
        %610 = vrot.lane.b32.xlu0 %v414, 24
        %v611 = vpop.permute.xlu0 %610
        %vm619 = vcmask 227520
        %620 = vst.msk [vmem:[#allocation2 + $0x1] sm:$0x7f] %vm619, %v599
        %621 = vst.msk [vmem:[#allocation2 + $0x9] sm:$0x7f] %vm619, %v601
        %622 = vst.msk [vmem:[#allocation2 + $0x11] sm:$0x7f] %vm619, %v603
        %623 = vst.msk [vmem:[#allocation2 + $0x19] sm:$0x7f] %vm619, %v605
        %624 = vst.msk [vmem:[#allocation2 + $0x21] sm:$0x7f] %vm619, %v607
        %625 = vst.msk [vmem:[#allocation2 + $0x29] sm:$0x7f] %vm619, %v609
        %626 = vst.msk [vmem:[#allocation2 + $0x31] sm:$0x7f] %vm619, %v611
        %627 = vrot.lane.b32.xlu0 %v396, 28
        %v628 = vpop.permute.xlu0 %627
        %629 = vrot.lane.b32.xlu0 %v399, 28
        %v630 = vpop.permute.xlu0 %629
        %631 = vrot.lane.b32.xlu0 %v402, 28
        %v632 = vpop.permute.xlu0 %631
        %633 = vrot.lane.b32.xlu0 %v405, 28
        %v634 = vpop.permute.xlu0 %633
        %635 = vrot.lane.b32.xlu0 %v408, 28
        %v636 = vpop.permute.xlu0 %635
        %637 = vrot.lane.b32.xlu0 %v411, 28
        %v638 = vpop.permute.xlu0 %637
        %639 = vrot.lane.b32.xlu0 %v414, 28
        %v640 = vpop.permute.xlu0 %639
        %vm648 = vcmask 261344
        %649 = vst.msk [vmem:[#allocation2] sm:$0xff] %vm648, %v628
        %650 = vst.msk [vmem:[#allocation2 + $0x8] sm:$0xff] %vm648, %v630
        %651 = vst.msk [vmem:[#allocation2 + $0x10] sm:$0xff] %vm648, %v632
        %652 = vst.msk [vmem:[#allocation2 + $0x18] sm:$0xff] %vm648, %v634
        %653 = vst.msk [vmem:[#allocation2 + $0x20] sm:$0xff] %vm648, %v636
        %654 = vst.msk [vmem:[#allocation2 + $0x28] sm:$0xff] %vm648, %v638
        %655 = vst.msk [vmem:[#allocation2 + $0x30] sm:$0xff] %vm648, %v640
        %656 = vrot.lane.b32.xlu0 %v396, 32
        %v657 = vpop.permute.xlu0 %656
        %658 = vrot.lane.b32.xlu0 %v399, 32
        %v659 = vpop.permute.xlu0 %658
        %660 = vrot.lane.b32.xlu0 %v402, 32
        %v661 = vpop.permute.xlu0 %660
        %662 = vrot.lane.b32.xlu0 %v405, 32
        %v663 = vpop.permute.xlu0 %662
        %664 = vrot.lane.b32.xlu0 %v408, 32
        %v665 = vpop.permute.xlu0 %664
        %666 = vrot.lane.b32.xlu0 %v411, 32
        %v667 = vpop.permute.xlu0 %666
        %668 = vrot.lane.b32.xlu0 %v414, 32
        %v669 = vpop.permute.xlu0 %668
        %vm677 = vcmask 294145
        %678 = vst.msk [vmem:[#allocation2 - $0x1] sm:$0xfe] %vm677, %v657
        %679 = vst.msk [vmem:[#allocation2 + $0x7] sm:$0xfe] %vm677, %v659
        %680 = vst.msk [vmem:[#allocation2 + $0xf] sm:$0xfe] %vm677, %v661
        %681 = vst.msk [vmem:[#allocation2 + $0x17] sm:$0xfe] %vm677, %v663
        %682 = vst.msk [vmem:[#allocation2 + $0x1f] sm:$0xfe] %vm677, %v665
        %683 = vst.msk [vmem:[#allocation2 + $0x27] sm:$0xfe] %vm677, %v667
        %684 = vst.msk [vmem:[#allocation2 + $0x2f] sm:$0xfe] %vm677, %v669
        %v685 = vld [vmem:[#allocation2] sm:$0xff]
        %v686 = vld [vmem:[#allocation2 + $0x8] sm:$0xff]
        %v687 = vld [vmem:[#allocation2 + $0x10] sm:$0xff]
        %v688 = vld [vmem:[#allocation2 + $0x18] sm:$0xff]
        %v689 = vld [vmem:[#allocation2 + $0x20] sm:$0xff]
        %v690 = vld [vmem:[#allocation2 + $0x28] sm:$0xff]
        %v691 = vld [vmem:[#allocation2 + $0x30] sm:$0xff]
        %v692 = vld [vmem:[#allocation2 + $0x38] sm:$0xff]
        %v693 = vld [vmem:[%s1] sm:$0xff]
        %v694 = vld [vmem:[%s1 + $0x8] sm:$0xff]
        %v695 = vld [vmem:[%s1 + $0x10] sm:$0xff]
        %v696 = vld [vmem:[%s1 + $0x18] sm:$0xff]
        %v697 = vld [vmem:[%s1 + $0x20] sm:$0xf]
        %v699 = vsel %vm415, %v685, 0
        %v702 = vsel %vm415, %v686, 0
        %v705 = vsel %vm415, %v687, 0
        %v708 = vsel %vm415, %v688, 0
        %v711 = vsel %vm415, %v689, 0
        %v714 = vsel %vm415, %v690, 0
        %v717 = vsel %vm415, %v691, 0
        %v720 = vsel %vm415, %v692, 0
        %vm722 = vcmask 1043456
        %v724 = vsel %vm722, %v697, 0
        %726 = vmatprep.subr.mxu0 0.0
        %727 = vmatpush1.msra.mxu0 %v693
        %728 = vmatprep.subr.mxu0 0.0
        %729 = vmatpush1.msra.mxu0 %v694
        %730 = vmatprep.subr.mxu0 0.0
        %731 = vmatpush1.msra.mxu0 %v695
        %732 = vmatprep.subr.mxu0 0.0
        %733 = vmatpush1.msra.mxu0 %v696
        %734 = vmatprep.subr.mxu0 0.0
        %735 = vmatpush1.msra.mxu0 %v724
        %736 = vmatprep.subr.mxu0 0.0
        %737 = vmatpush1.msra.mxu0 0.0
        %738 = vmatprep.subr.mxu0 0.0
        %739 = vmatpush1.msra.mxu0 0.0
        %740 = vmatprep.subr.mxu0 0.0
        %741 = vmatpush1.msra.mxu0 0.0
        %742 = vmatprep.subr.mxu0 0.0
        %743 = vmatpush1.msra.mxu0 0.0
        %744 = vmatprep.subr.mxu0 0.0
        %745 = vmatpush1.msra.mxu0 0.0
        %746 = vmatprep.subr.mxu0 0.0
        %747 = vmatpush1.msra.mxu0 0.0
        %748 = vmatprep.subr.mxu0 0.0
        %749 = vmatpush1.msra.mxu0 0.0
        %750 = vmatprep.subr.mxu0 0.0
        %751 = vmatpush1.msra.mxu0 0.0
        %752 = vmatprep.subr.mxu0 0.0
        %753 = vmatpush1.msra.mxu0 0.0
        %754 = vmatprep.subr.mxu0 0.0
        %755 = vmatpush1.msra.mxu0 0.0
        %756 = vmatprep.subr.mxu0 0.0
        %757 = vmatpush1.msra.mxu0 0.0
        %758 = vmatprep.subr.mxu0 0.0
        %759 = vmatpush1.msra.mxu0 0.0
        %760 = vmatprep.subr.mxu0 0.0
        %761 = vmatpush1.msra.mxu0 0.0
        %762 = vmatprep.subr.mxu0 0.0
        %763 = vmatpush1.msra.mxu0 0.0
        %764 = vmatprep.subr.mxu0 0.0
        %765 = vmatpush1.msra.mxu0 0.0
        %766 = vmatprep.subr.mxu0 0.0
        %767 = vmatpush1.msra.mxu0 0.0
        %768 = vmatprep.subr.mxu0 0.0
        %769 = vmatpush1.msra.mxu0 0.0
        %770 = vmatprep.subr.mxu0 0.0
        %771 = vmatpush1.msra.mxu0 0.0
        %772 = vmatprep.subr.mxu0 0.0
        %773 = vmatpush1.msra.mxu0 0.0
        %774 = vmatprep.subr.mxu0 0.0
        %775 = vmatpush1.msra.mxu0 0.0
        %776 = vmatprep.subr.mxu0 0.0
        %777 = vmatpush1.msra.mxu0 0.0
        %778 = vmatprep.subr.mxu0 0.0
        %779 = vmatpush1.msra.mxu0 0.0
        %780 = vmatprep.subr.mxu0 0.0
        %781 = vmatpush1.msra.mxu0 0.0
        %782 = vmatprep.subr.mxu0 0.0
        %783 = vmatpush1.msra.mxu0 0.0
        %784 = vmatprep.subr.mxu0 0.0
        %785 = vmatpush1.msra.mxu0 0.0
        %786 = vmatprep.subr.mxu0 0.0
        %787 = vmatpush1.msra.mxu0 0.0
        %788 = vmatprep.subr.mxu0 0.0
        %789 = vmatpush1.msra.mxu0 0.0
        %790 = vmatprep.mubr.f32.mxu0 0.0
        %791 = vmatmul.mubr.f32.gmra.mrb[0].mxu0 %v699
        %v792 = vpop.f32.mrb[0].mxu0
        %v793 = vadd.f32 0.0, %v792
        %v794 = vpop.f32.mrb[0].mxu0
        %795 = vmatprep.mubr.f32.mxu0 0.0
        %796 = vmatmul.mubr.f32.gmra.mrb[0].mxu0 %v702
        %v797 = vpop.f32.mrb[0].mxu0
        %v798 = vadd.f32 0.0, %v797
        %v799 = vpop.f32.mrb[0].mxu0
        %800 = vmatprep.mubr.f32.mxu0 0.0
        %801 = vmatmul.mubr.f32.gmra.mrb[0].mxu0 %v705
        %v802 = vpop.f32.mrb[0].mxu0
        %v803 = vadd.f32 0.0, %v802
        %v804 = vpop.f32.mrb[0].mxu0
        %805 = vmatprep.mubr.f32.mxu0 0.0
        %806 = vmatmul.mubr.f32.gmra.mrb[0].mxu0 %v708
        %v807 = vpop.f32.mrb[0].mxu0
        %v808 = vadd.f32 0.0, %v807
        %v809 = vpop.f32.mrb[0].mxu0
        %810 = vmatprep.mubr.f32.mxu0 0.0
        %811 = vmatmul.mubr.f32.gmra.mrb[0].mxu0 %v711
        %v812 = vpop.f32.mrb[0].mxu0
        %v813 = vadd.f32 0.0, %v812
        %v814 = vpop.f32.mrb[0].mxu0
        %815 = vmatprep.mubr.f32.mxu0 0.0
        %816 = vmatmul.mubr.f32.gmra.mrb[0].mxu0 %v714
        %v817 = vpop.f32.mrb[0].mxu0
        %v818 = vadd.f32 0.0, %v817
        %v819 = vpop.f32.mrb[0].mxu0
        %820 = vmatprep.mubr.f32.mxu0 0.0
        %821 = vmatmul.mubr.f32.gmra.mrb[0].mxu0 %v717
        %v822 = vpop.f32.mrb[0].mxu0
        %v823 = vadd.f32 0.0, %v822
        %v824 = vpop.f32.mrb[0].mxu0
        %825 = vmatprep.mubr.f32.mxu0 0.0
        %826 = vmatmul.mubr.f32.gmra.mrb[0].mxu0 %v720
        %v827 = vpop.f32.mrb[0].mxu0
        %v828 = vadd.f32 0.0, %v827
        %v829 = vpop.f32.mrb[0].mxu0
        %830 = vdwg.mxu0
        %v831 = vld [vmem:[%s2] sm:$0x1]
        %v832 = vld [vmem:[%s3] sm:$0x1]
        %v834 = vlaneseq
        %v835 = vshrl.u32 %v834, 7
        %v836 = vsub.s32 0, %v835
        %v837 = vrot.slane %v831, %v836
        %v839 = vmul.f32 %v793, %v837
        %v840 = vmul.f32 %v798, %v837
        %v841 = vmul.f32 %v803, %v837
        %v842 = vmul.f32 %v808, %v837
        %v843 = vmul.f32 %v813, %v837
        %v844 = vmul.f32 %v818, %v837
        %v845 = vmul.f32 %v823, %v837
        %v846 = vmul.f32 %v828, %v837
        %v848 = vlaneseq
        %v849 = vshrl.u32 %v848, 7
        %v850 = vsub.s32 0, %v849
        %v851 = vrot.slane %v832, %v850
        %v853 = vadd.f32 %v839, %v851
        %v854 = vadd.f32 %v840, %v851
        %v855 = vadd.f32 %v841, %v851
        %v856 = vadd.f32 %v842, %v851
        %v857 = vadd.f32 %v843, %v851
        %v858 = vadd.f32 %v844, %v851
        %v859 = vadd.f32 %v845, %v851
        %v860 = vadd.f32 %v846, %v851
        %v861 = vmin.f32 %v853, 20.0
        %v862 = vmin.f32 %v854, 20.0
        %v863 = vmin.f32 %v855, 20.0
        %v864 = vmin.f32 %v856, 20.0
        %v865 = vmin.f32 %v857, 20.0
        %v866 = vmin.f32 %v858, 20.0
        %v867 = vmin.f32 %v859, 20.0
        %v868 = vmin.f32 %v860, 20.0
        %v869 = vmul.f32 %v861, 1.442695
        %v870 = vpow.pop %v869
        %v871 = vmul.f32 %v862, 1.442695
        %v872 = vpow.pop %v871
        %v873 = vmul.f32 %v863, 1.442695
        %v874 = vpow.pop %v873
        %v875 = vmul.f32 %v864, 1.442695
        %v876 = vpow.pop %v875
        %v877 = vmul.f32 %v865, 1.442695
        %v878 = vpow.pop %v877
        %v879 = vmul.f32 %v866, 1.442695
        %v880 = vpow.pop %v879
        %v881 = vmul.f32 %v867, 1.442695
        %v882 = vpow.pop %v881
        %v883 = vmul.f32 %v868, 1.442695
        %v884 = vpow.pop %v883
        %v885 = vadd.f32 %v870, 1.0
        %v886 = vadd.f32 %v872, 1.0
        %v887 = vadd.f32 %v874, 1.0
        %v888 = vadd.f32 %v876, 1.0
        %v889 = vadd.f32 %v878, 1.0
        %v890 = vadd.f32 %v880, 1.0
        %v891 = vadd.f32 %v882, 1.0
        %v892 = vadd.f32 %v884, 1.0
        %v893 = vmul.f32 %v885, %v885
        %v894 = vmul.f32 %v886, %v886
        %v895 = vmul.f32 %v887, %v887
        %v896 = vmul.f32 %v888, %v888
        %v897 = vmul.f32 %v889, %v889
        %v898 = vmul.f32 %v890, %v890
        %v899 = vmul.f32 %v891, %v891
        %v900 = vmul.f32 %v892, %v892
        %vm901 = vcmp.gt.f32.partialorder %v853, 20.0
        %vm902 = vcmp.gt.f32.partialorder %v854, 20.0
        %vm903 = vcmp.gt.f32.partialorder %v855, 20.0
        %vm904 = vcmp.gt.f32.partialorder %v856, 20.0
        %vm905 = vcmp.gt.f32.partialorder %v857, 20.0
        %vm906 = vcmp.gt.f32.partialorder %v858, 20.0
        %vm907 = vcmp.gt.f32.partialorder %v859, 20.0
        %vm908 = vcmp.gt.f32.partialorder %v860, 20.0
        %v909 = vsub.f32 %v893, 1.0
        %v910 = vsub.f32 %v894, 1.0
        %v911 = vsub.f32 %v895, 1.0
        %v912 = vsub.f32 %v896, 1.0
        %v913 = vsub.f32 %v897, 1.0
        %v914 = vsub.f32 %v898, 1.0
        %v915 = vsub.f32 %v899, 1.0
        %v916 = vsub.f32 %v900, 1.0
        %v917 = vadd.f32 %v893, 1.0
        %v918 = vadd.f32 %v894, 1.0
        %v919 = vadd.f32 %v895, 1.0
        %v920 = vadd.f32 %v896, 1.0
        %v921 = vadd.f32 %v897, 1.0
        %v922 = vadd.f32 %v898, 1.0
        %v923 = vadd.f32 %v899, 1.0
        %v924 = vadd.f32 %v900, 1.0
        %v925 = vrcp.pop %v917
        %v926 = vrcp.pop %v918
        %v927 = vrcp.pop %v919
        %v928 = vrcp.pop %v920
        %v929 = vrcp.pop %v921
        %v930 = vrcp.pop %v922
        %v931 = vrcp.pop %v923
        %v932 = vrcp.pop %v924
        %v933 = vmul.f32 %v909, %v925
        %v934 = vmul.f32 %v910, %v926
        %v935 = vmul.f32 %v911, %v927
        %v936 = vmul.f32 %v912, %v928
        %v937 = vmul.f32 %v913, %v929
        %v938 = vmul.f32 %v914, %v930
        %v939 = vmul.f32 %v915, %v931
        %v940 = vmul.f32 %v916, %v932
        %v941 = vsel %vm901, 1.0, %v933
        %v942 = vsel %vm902, 1.0, %v934
        %v943 = vsel %vm903, 1.0, %v935
        %v944 = vsel %vm904, 1.0, %v936
        %v945 = vsel %vm905, 1.0, %v937
        %v946 = vsel %vm906, 1.0, %v938
        %v947 = vsel %vm907, 1.0, %v939
        %v948 = vsel %vm908, 1.0, %v940
        %v949 = vmul.f32 %v853, %v941
        %v950 = vmul.f32 %v854, %v942
        %v951 = vmul.f32 %v855, %v943
        %v952 = vmul.f32 %v856, %v944
        %v953 = vmul.f32 %v857, %v945
        %v954 = vmul.f32 %v858, %v946
        %v955 = vmul.f32 %v859, %v947
        %v956 = vmul.f32 %v860, %v948
        %957 = vst [vmem:[#allocation3] sm:$0xff] 0.0
        %958 = vst [vmem:[#allocation3 + $0x8] sm:$0xff] 0.0
        %959 = vst [vmem:[#allocation3 + $0x10] sm:$0xff] 0.0
        %960 = vst [vmem:[#allocation3 + $0x18] sm:$0xff] 0.0
        %961 = vst [vmem:[#allocation3 + $0x20] sm:$0xff] 0.0
        %962 = vst [vmem:[#allocation3 + $0x28] sm:$0xff] 0.0
        %963 = vst [vmem:[#allocation3 + $0x30] sm:$0xff] 0.0
        %964 = vst [vmem:[#allocation3 + $0x38] sm:$0xff] 0.0
        %965 = vst [vmem:[#allocation3 + $0x40] sm:$0xff] 0.0
        %966 = vst [vmem:[#allocation3 + $0x48] sm:$0xff] 0.0
        %967 = vst [vmem:[#allocation3 + $0x50] sm:$0xff] 0.0
        %968 = vst [vmem:[#allocation3 + $0x58] sm:$0xff] 0.0
        %969 = vst [vmem:[#allocation3 + $0x60] sm:$0xff] 0.0
        %970 = vst [vmem:[#allocation3 + $0x68] sm:$0xff] 0.0
        %971 = vst [vmem:[#allocation3 + $0x70] sm:$0xff] 0.0
        %972 = vst [vmem:[#allocation3 + $0x78] sm:$0xff] 0.0
        %973 = vst [vmem:[#allocation3 + $0x80] sm:$0xff] 0.0
        %974 = vst [vmem:[#allocation3 + $0x88] sm:$0xff] 0.0
        %975 = vst [vmem:[#allocation3 + $0x90] sm:$0xff] 0.0
        %976 = vst [vmem:[#allocation3 + $0x98] sm:$0xff] 0.0
        %977 = vst [vmem:[#allocation3 + $0xa0] sm:$0xff] 0.0
        %978 = vst [vmem:[#allocation3 + $0xa8] sm:$0xff] 0.0
        %979 = vst [vmem:[#allocation3 + $0xb0] sm:$0xff] 0.0
        %980 = vst [vmem:[#allocation3 + $0xb8] sm:$0xff] 0.0
        %981 = vst [vmem:[#allocation3 + $0xc0] sm:$0xff] 0.0
        %982 = vst [vmem:[#allocation3 + $0xc8] sm:$0xff] 0.0
        %983 = vst [vmem:[#allocation3 + $0xd0] sm:$0xff] 0.0
        %984 = vst [vmem:[#allocation3 + $0xd8] sm:$0xff] 0.0
        %985 = vst [vmem:[#allocation3 + $0xe0] sm:$0xff] 0.0
        %986 = vst [vmem:[#allocation3 + $0xe8] sm:$0xff] 0.0
        %987 = vst [vmem:[#allocation3 + $0xf0] sm:$0xff] 0.0
        %988 = vst [vmem:[#allocation3 + $0xf8] sm:$0xff] 0.0
        %989 = vst [vmem:[#allocation3 + $0x100] sm:$0xff] 0.0
        %990 = vst [vmem:[#allocation3 + $0x108] sm:$0xff] 0.0
        %991 = vst [vmem:[#allocation3 + $0x110] sm:$0xff] 0.0
        %992 = vst [vmem:[#allocation3 + $0x118] sm:$0xff] 0.0
        %993 = vst [vmem:[#allocation3 + $0x120] sm:$0xff] 0.0
        %994 = vst [vmem:[#allocation3 + $0x128] sm:$0xff] 0.0
        %995 = vst [vmem:[#allocation3 + $0x130] sm:$0xff] 0.0
        %996 = vst [vmem:[#allocation3 + $0x138] sm:$0xff] 0.0
        %997 = vst [vmem:[#allocation3 + $0x140] sm:$0xff] 0.0
        %998 = vst [vmem:[#allocation3 + $0x148] sm:$0xff] 0.0
        %999 = vst [vmem:[#allocation3 + $0x150] sm:$0xff] 0.0
        %1000 = vst [vmem:[#allocation3 + $0x158] sm:$0xff] 0.0
        %1001 = vst [vmem:[#allocation3 + $0x160] sm:$0xff] 0.0
        %1002 = vst [vmem:[#allocation3 + $0x168] sm:$0xff] 0.0
        %1003 = vst [vmem:[#allocation3 + $0x170] sm:$0xff] 0.0
        %1004 = vst [vmem:[#allocation3 + $0x178] sm:$0xff] 0.0
        %1005 = vst [vmem:[#allocation3 + $0x180] sm:$0xff] 0.0
        %1006 = vst [vmem:[#allocation3 + $0x188] sm:$0xff] 0.0
        %1007 = vst [vmem:[#allocation3 + $0x190] sm:$0xff] 0.0
        %1008 = vst [vmem:[#allocation3 + $0x198] sm:$0xff] 0.0
        %1009 = vst [vmem:[#allocation3 + $0x1a0] sm:$0xff] 0.0
        %1010 = vst [vmem:[#allocation3 + $0x1a8] sm:$0xff] 0.0
        %1011 = vst [vmem:[#allocation3 + $0x1b0] sm:$0xff] 0.0
        %1012 = vst [vmem:[#allocation3 + $0x1b8] sm:$0xff] 0.0
        %1013 = vst [vmem:[#allocation3 + $0x1c0] sm:$0xff] 0.0
        %1014 = vst [vmem:[#allocation3 + $0x1c8] sm:$0xff] 0.0
        %1015 = vst [vmem:[#allocation3 + $0x1d0] sm:$0xff] 0.0
        %1016 = vst [vmem:[#allocation3 + $0x1d8] sm:$0xff] 0.0
        %1017 = vst [vmem:[#allocation3 + $0x1e0] sm:$0xff] 0.0
        %1018 = vst [vmem:[#allocation3 + $0x1e8] sm:$0xff] 0.0
        %1019 = vst [vmem:[#allocation3 + $0x1f0] sm:$0xff] 0.0
        %1020 = vst [vmem:[#allocation3 + $0x1f8] sm:$0xff] 0.0
        %1021 = vst [vmem:[#allocation3 + $0x200] sm:$0xff] 0.0
        %1022 = vst [vmem:[#allocation3 + $0x208] sm:$0xff] 0.0
        %1023 = vst [vmem:[#allocation3 + $0x210] sm:$0xff] 0.0
        %1024 = vst [vmem:[#allocation3 + $0x218] sm:$0xff] 0.0
        %1025 = vst [vmem:[#allocation3 + $0x220] sm:$0xff] 0.0
        %1026 = vst [vmem:[#allocation3 + $0x228] sm:$0xff] 0.0
        %1027 = vst [vmem:[#allocation3 + $0x230] sm:$0xff] 0.0
        %1028 = vst [vmem:[#allocation3 + $0x238] sm:$0xff] 0.0
        %v1036 = vrot.slane %v949, 7
        %v1037 = vrot.slane %v950, 7
        %v1038 = vrot.slane %v951, 7
        %v1039 = vrot.slane %v952, 7
        %v1040 = vrot.slane %v953, 7
        %v1041 = vrot.slane %v954, 7
        %v1042 = vrot.slane %v955, 7
        %s1050 = scalar_lea.vmem [#allocation3], 72
        %1051 = vst [vmem:[%s1050] sm:$0xfe] %v1036
        %1052 = vst [vmem:[%s1050 + $0x48] sm:$0xfe] %v1037
        %1053 = vst [vmem:[%s1050 + $0x90] sm:$0xfe] %v1038
        %1054 = vst [vmem:[%s1050 + $0xd8] sm:$0xfe] %v1039
        %1055 = vst [vmem:[%s1050 + $0x120] sm:$0xfe] %v1040
        %1056 = vst [vmem:[%s1050 + $0x168] sm:$0xfe] %v1041
        %1057 = vst [vmem:[%s1050 + $0x1b0] sm:$0xfe] %v1042
        %1058 = vst [vmem:[%s1050 + $0x8] sm:$0xff] %v949
        %1059 = vst [vmem:[%s1050 + $0x50] sm:$0xff] %v950
        %1060 = vst [vmem:[%s1050 + $0x98] sm:$0xff] %v951
        %1061 = vst [vmem:[%s1050 + $0xe0] sm:$0xff] %v952
        %1062 = vst [vmem:[%s1050 + $0x128] sm:$0xff] %v953
        %1063 = vst [vmem:[%s1050 + $0x170] sm:$0xff] %v954
        %1064 = vst [vmem:[%s1050 + $0x1b8] sm:$0xff] %v955
        %v1065 = vrot.slane %v949, 1
        %v1066 = vrot.slane %v950, 1
        %v1067 = vrot.slane %v951, 1
        %v1068 = vrot.slane %v952, 1
        %v1069 = vrot.slane %v953, 1
        %v1070 = vrot.slane %v954, 1
        %v1071 = vrot.slane %v955, 1
        %1079 = vst [vmem:[%s1050 + $0x10] sm:$0x7f] %v1065
        %1080 = vst [vmem:[%s1050 + $0x58] sm:$0x7f] %v1066
        %1081 = vst [vmem:[%s1050 + $0xa0] sm:$0x7f] %v1067
        %1082 = vst [vmem:[%s1050 + $0xe8] sm:$0x7f] %v1068
        %1083 = vst [vmem:[%s1050 + $0x130] sm:$0x7f] %v1069
        %1084 = vst [vmem:[%s1050 + $0x178] sm:$0x7f] %v1070
        %1085 = vst [vmem:[%s1050 + $0x1c0] sm:$0x7f] %v1071
        %v1087 = vrot.slane %v956, 7
        %1089 = vst [vmem:[#allocation3 + $0x18] sm:$0xfe] %v1036
        %1090 = vst [vmem:[#allocation3 + $0x60] sm:$0xfe] %v1037
        %1091 = vst [vmem:[#allocation3 + $0xa8] sm:$0xfe] %v1038
        %1092 = vst [vmem:[#allocation3 + $0xf0] sm:$0xfe] %v1039
        %1093 = vst [vmem:[#allocation3 + $0x138] sm:$0xfe] %v1040
        %1094 = vst [vmem:[#allocation3 + $0x180] sm:$0xfe] %v1041
        %1095 = vst [vmem:[#allocation3 + $0x1c8] sm:$0xfe] %v1042
        %1096 = vst [vmem:[#allocation3 + $0x210] sm:$0xfe] %v1087
        %1097 = vst [vmem:[#allocation3 + $0x20] sm:$0xff] %v949
        %1098 = vst [vmem:[#allocation3 + $0x68] sm:$0xff] %v950
        %1099 = vst [vmem:[#allocation3 + $0xb0] sm:$0xff] %v951
        %1100 = vst [vmem:[#allocation3 + $0xf8] sm:$0xff] %v952
        %1101 = vst [vmem:[#allocation3 + $0x140] sm:$0xff] %v953
        %1102 = vst [vmem:[#allocation3 + $0x188] sm:$0xff] %v954
        %1103 = vst [vmem:[#allocation3 + $0x1d0] sm:$0xff] %v955
        %1104 = vst [vmem:[#allocation3 + $0x218] sm:$0xff] %v956
        %v1105 = vrot.slane %v956, 1
        %1107 = vst [vmem:[#allocation3 + $0x28] sm:$0x7f] %v1065
        %1108 = vst [vmem:[#allocation3 + $0x70] sm:$0x7f] %v1066
        %1109 = vst [vmem:[#allocation3 + $0xb8] sm:$0x7f] %v1067
        %1110 = vst [vmem:[#allocation3 + $0x100] sm:$0x7f] %v1068
        %1111 = vst [vmem:[#allocation3 + $0x148] sm:$0x7f] %v1069
        %1112 = vst [vmem:[#allocation3 + $0x190] sm:$0x7f] %v1070
        %1113 = vst [vmem:[#allocation3 + $0x1d8] sm:$0x7f] %v1071
        %1114 = vst [vmem:[#allocation3 + $0x220] sm:$0x7f] %v1105
        %1115 = vst [vmem:[#allocation3 + $0x30] sm:$0xfe] %v1037
        %1116 = vst [vmem:[#allocation3 + $0x78] sm:$0xfe] %v1038
        %1117 = vst [vmem:[#allocation3 + $0xc0] sm:$0xfe] %v1039
        %1118 = vst [vmem:[#allocation3 + $0x108] sm:$0xfe] %v1040
        %1119 = vst [vmem:[#allocation3 + $0x150] sm:$0xfe] %v1041
        %1120 = vst [vmem:[#allocation3 + $0x198] sm:$0xfe] %v1042
        %1121 = vst [vmem:[#allocation3 + $0x1e0] sm:$0xfe] %v1087
        %1122 = vst [vmem:[#allocation3 + $0x38] sm:$0xff] %v950
        %1123 = vst [vmem:[#allocation3 + $0x80] sm:$0xff] %v951
        %1124 = vst [vmem:[#allocation3 + $0xc8] sm:$0xff] %v952
        %1125 = vst [vmem:[#allocation3 + $0x110] sm:$0xff] %v953
        %1126 = vst [vmem:[#allocation3 + $0x158] sm:$0xff] %v954
        %1127 = vst [vmem:[#allocation3 + $0x1a0] sm:$0xff] %v955
        %1128 = vst [vmem:[#allocation3 + $0x1e8] sm:$0xff] %v956
        %1129 = vst [vmem:[#allocation3 + $0x40] sm:$0x7f] %v1066
        %1130 = vst [vmem:[#allocation3 + $0x88] sm:$0x7f] %v1067
        %1131 = vst [vmem:[#allocation3 + $0xd0] sm:$0x7f] %v1068
        %1132 = vst [vmem:[#allocation3 + $0x118] sm:$0x7f] %v1069
        %1133 = vst [vmem:[#allocation3 + $0x160] sm:$0x7f] %v1070
        %1134 = vst [vmem:[#allocation3 + $0x1a8] sm:$0x7f] %v1071
        %1135 = vst [vmem:[#allocation3 + $0x1f0] sm:$0x7f] %v1105
        %v1136 = vld [vmem:[#allocation3] sm:$0xff]
        %v1137 = vld [vmem:[#allocation3 + $0x8] sm:$0xff]
        %v1138 = vld [vmem:[#allocation3 + $0x10] sm:$0xff]
        %v1139 = vld [vmem:[#allocation3 + $0x18] sm:$0xff]
        %v1140 = vld [vmem:[#allocation3 + $0x20] sm:$0xff]
        %v1141 = vld [vmem:[#allocation3 + $0x28] sm:$0xff]
        %v1142 = vld [vmem:[#allocation3 + $0x30] sm:$0xff]
        %v1143 = vld [vmem:[#allocation3 + $0x38] sm:$0xff]
        %v1144 = vld [vmem:[#allocation3 + $0x40] sm:$0xff]
        %v1145 = vld [vmem:[#allocation3 + $0x48] sm:$0xff]
        %v1146 = vld [vmem:[#allocation3 + $0x50] sm:$0xff]
        %v1147 = vld [vmem:[#allocation3 + $0x58] sm:$0xff]
        %v1148 = vld [vmem:[#allocation3 + $0x60] sm:$0xff]
        %v1149 = vld [vmem:[#allocation3 + $0x68] sm:$0xff]
        %v1150 = vld [vmem:[#allocation3 + $0x70] sm:$0xff]
        %v1151 = vld [vmem:[#allocation3 + $0x78] sm:$0xff]
        %v1152 = vld [vmem:[#allocation3 + $0x80] sm:$0xff]
        %v1153 = vld [vmem:[#allocation3 + $0x88] sm:$0xff]
        %v1154 = vld [vmem:[#allocation3 + $0x90] sm:$0xff]
        %v1155 = vld [vmem:[#allocation3 + $0x98] sm:$0xff]
        %v1156 = vld [vmem:[#allocation3 + $0xa0] sm:$0xff]
        %v1157 = vld [vmem:[#allocation3 + $0xa8] sm:$0xff]
        %v1158 = vld [vmem:[#allocation3 + $0xb0] sm:$0xff]
        %v1159 = vld [vmem:[#allocation3 + $0xb8] sm:$0xff]
        %v1160 = vld [vmem:[#allocation3 + $0xc0] sm:$0xff]
        %v1161 = vld [vmem:[#allocation3 + $0xc8] sm:$0xff]
        %v1162 = vld [vmem:[#allocation3 + $0xd0] sm:$0xff]
        %v1163 = vld [vmem:[#allocation3 + $0xd8] sm:$0xff]
        %v1164 = vld [vmem:[#allocation3 + $0xe0] sm:$0xff]
        %v1165 = vld [vmem:[#allocation3 + $0xe8] sm:$0xff]
        %v1166 = vld [vmem:[#allocation3 + $0xf0] sm:$0xff]
        %v1167 = vld [vmem:[#allocation3 + $0xf8] sm:$0xff]
        %v1168 = vld [vmem:[#allocation3 + $0x100] sm:$0xff]
        %v1169 = vld [vmem:[#allocation3 + $0x108] sm:$0xff]
        %v1170 = vld [vmem:[#allocation3 + $0x110] sm:$0xff]
        %v1171 = vld [vmem:[#allocation3 + $0x118] sm:$0xff]
        %v1172 = vld [vmem:[#allocation3 + $0x120] sm:$0xff]
        %v1173 = vld [vmem:[#allocation3 + $0x128] sm:$0xff]
        %v1174 = vld [vmem:[#allocation3 + $0x130] sm:$0xff]
        %v1175 = vld [vmem:[#allocation3 + $0x138] sm:$0xff]
        %v1176 = vld [vmem:[#allocation3 + $0x140] sm:$0xff]
        %v1177 = vld [vmem:[#allocation3 + $0x148] sm:$0xff]
        %v1178 = vld [vmem:[#allocation3 + $0x150] sm:$0xff]
        %v1179 = vld [vmem:[#allocation3 + $0x158] sm:$0xff]
        %v1180 = vld [vmem:[#allocation3 + $0x160] sm:$0xff]
        %v1181 = vld [vmem:[#allocation3 + $0x168] sm:$0xff]
        %v1182 = vld [vmem:[#allocation3 + $0x170] sm:$0xff]
        %v1183 = vld [vmem:[#allocation3 + $0x178] sm:$0xff]
        %v1184 = vld [vmem:[#allocation3 + $0x180] sm:$0xff]
        %v1185 = vld [vmem:[#allocation3 + $0x188] sm:$0xff]
        %v1186 = vld [vmem:[#allocation3 + $0x190] sm:$0xff]
        %v1187 = vld [vmem:[#allocation3 + $0x198] sm:$0xff]
        %v1188 = vld [vmem:[#allocation3 + $0x1a0] sm:$0xff]
        %v1189 = vld [vmem:[#allocation3 + $0x1a8] sm:$0xff]
        %v1190 = vld [vmem:[#allocation3 + $0x1b0] sm:$0xff]
        %v1191 = vld [vmem:[#allocation3 + $0x1b8] sm:$0xff]
        %v1192 = vld [vmem:[#allocation3 + $0x1c0] sm:$0xff]
        %v1193 = vld [vmem:[#allocation3 + $0x1c8] sm:$0xff]
        %v1194 = vld [vmem:[#allocation3 + $0x1d0] sm:$0xff]
        %v1195 = vld [vmem:[#allocation3 + $0x1d8] sm:$0xff]
        %v1196 = vld [vmem:[#allocation3 + $0x1e0] sm:$0xff]
        %v1197 = vld [vmem:[#allocation3 + $0x1e8] sm:$0xff]
        %v1198 = vld [vmem:[#allocation3 + $0x1f0] sm:$0xff]
        %v1199 = vld [vmem:[#allocation3 + $0x1f8] sm:$0xff]
        %v1200 = vld [vmem:[#allocation3 + $0x200] sm:$0xff]
        %v1201 = vld [vmem:[#allocation3 + $0x208] sm:$0xff]
        %v1202 = vld [vmem:[#allocation3 + $0x210] sm:$0xff]
        %v1203 = vld [vmem:[#allocation3 + $0x218] sm:$0xff]
        %v1204 = vld [vmem:[#allocation3 + $0x220] sm:$0xff]
        %v1205 = vld [vmem:[#allocation3 + $0x228] sm:$0xff]
        %v1206 = vld [vmem:[#allocation3 + $0x230] sm:$0xff]
        %v1207 = vld [vmem:[#allocation3 + $0x238] sm:$0xff]
        %v1208 = vld [vmem:[#allocation4] sm:$0xff]
        %v1209 = vld [vmem:[#allocation4 + $0x8] sm:$0xff]
        %v1210 = vld [vmem:[#allocation4 + $0x10] sm:$0xff]
        %v1211 = vld [vmem:[#allocation4 + $0x18] sm:$0xff]
        %v1212 = vld [vmem:[#allocation4 + $0x20] sm:$0xff]
        %v1213 = vld [vmem:[#allocation4 + $0x28] sm:$0xff]
        %v1214 = vld [vmem:[#allocation4 + $0x30] sm:$0xff]
        %v1215 = vld [vmem:[#allocation4 + $0x38] sm:$0xff]
        %v1216 = vld [vmem:[#allocation4 + $0x40] sm:$0xff]
        %v1217 = vld [vmem:[#allocation4 + $0x48] sm:$0xff]
        %v1218 = vld [vmem:[#allocation4 + $0x50] sm:$0xff]
        %v1219 = vld [vmem:[#allocation4 + $0x58] sm:$0xff]
        %v1220 = vld [vmem:[#allocation4 + $0x60] sm:$0xff]
        %v1221 = vld [vmem:[#allocation4 + $0x68] sm:$0xff]
        %v1222 = vld [vmem:[#allocation4 + $0x70] sm:$0xff]
        %v1223 = vld [vmem:[#allocation4 + $0x78] sm:$0xff]
        %v1224 = vld [vmem:[#allocation4 + $0x80] sm:$0xff]
        %v1225 = vld [vmem:[#allocation4 + $0x88] sm:$0xff]
        %v1226 = vld [vmem:[#allocation4 + $0x90] sm:$0xff]
        %v1227 = vld [vmem:[#allocation4 + $0x98] sm:$0xff]
        %v1228 = vld [vmem:[#allocation4 + $0xa0] sm:$0xff]
        %v1229 = vld [vmem:[#allocation4 + $0xa8] sm:$0xff]
        %v1230 = vld [vmem:[#allocation4 + $0xb0] sm:$0xff]
        %v1231 = vld [vmem:[#allocation4 + $0xb8] sm:$0xff]
        %v1232 = vld [vmem:[#allocation4 + $0xc0] sm:$0xff]
        %v1233 = vld [vmem:[#allocation4 + $0xc8] sm:$0xff]
        %v1234 = vld [vmem:[#allocation4 + $0xd0] sm:$0xff]
        %v1235 = vld [vmem:[#allocation4 + $0xd8] sm:$0xff]
        %v1236 = vld [vmem:[#allocation4 + $0xe0] sm:$0xff]
        %v1237 = vld [vmem:[#allocation4 + $0xe8] sm:$0xff]
        %v1238 = vld [vmem:[#allocation4 + $0xf0] sm:$0xff]
        %v1239 = vld [vmem:[#allocation4 + $0xf8] sm:$0xff]
        %v1240 = vld [vmem:[#allocation4 + $0x100] sm:$0xff]
        %v1241 = vld [vmem:[#allocation4 + $0x108] sm:$0xff]
        %v1242 = vld [vmem:[#allocation4 + $0x110] sm:$0xff]
        %v1243 = vld [vmem:[#allocation4 + $0x118] sm:$0xff]
        %v1244 = vld [vmem:[#allocation4 + $0x120] sm:$0xff]
        %v1245 = vld [vmem:[#allocation4 + $0x128] sm:$0xff]
        %v1246 = vld [vmem:[#allocation4 + $0x130] sm:$0xff]
        %v1247 = vld [vmem:[#allocation4 + $0x138] sm:$0xff]
        %v1248 = vld [vmem:[#allocation4 + $0x140] sm:$0xff]
        %v1249 = vld [vmem:[#allocation4 + $0x148] sm:$0xff]
        %v1250 = vld [vmem:[#allocation4 + $0x150] sm:$0xff]
        %v1251 = vld [vmem:[#allocation4 + $0x158] sm:$0xff]
        %v1252 = vld [vmem:[#allocation4 + $0x160] sm:$0xff]
        %v1253 = vld [vmem:[#allocation4 + $0x168] sm:$0xff]
        %v1254 = vld [vmem:[#allocation4 + $0x170] sm:$0xff]
        %v1255 = vld [vmem:[#allocation4 + $0x178] sm:$0xff]
        %v1256 = vld [vmem:[#allocation4 + $0x180] sm:$0xff]
        %v1257 = vld [vmem:[#allocation4 + $0x188] sm:$0xff]
        %v1258 = vld [vmem:[#allocation4 + $0x190] sm:$0xff]
        %v1259 = vld [vmem:[#allocation4 + $0x198] sm:$0xff]
        %v1260 = vld [vmem:[#allocation4 + $0x1a0] sm:$0xff]
        %v1261 = vld [vmem:[#allocation4 + $0x1a8] sm:$0xff]
        %v1262 = vld [vmem:[#allocation4 + $0x1b0] sm:$0xff]
        %v1263 = vld [vmem:[#allocation4 + $0x1b8] sm:$0xff]
        %v1264 = vld [vmem:[#allocation4 + $0x1c0] sm:$0xff]
        %v1265 = vld [vmem:[#allocation4 + $0x1c8] sm:$0xff]
        %v1266 = vld [vmem:[#allocation4 + $0x1d0] sm:$0xff]
        %v1267 = vld [vmem:[#allocation4 + $0x1d8] sm:$0xff]
        %v1268 = vld [vmem:[#allocation4 + $0x1e0] sm:$0xff]
        %v1269 = vld [vmem:[#allocation4 + $0x1e8] sm:$0xff]
        %v1270 = vld [vmem:[#allocation4 + $0x1f0] sm:$0xff]
        %v1271 = vld [vmem:[#allocation4 + $0x1f8] sm:$0xff]
        %v1272 = vld [vmem:[#allocation4 + $0x200] sm:$0xff]
        %v1273 = vld [vmem:[#allocation4 + $0x208] sm:$0xff]
        %v1274 = vld [vmem:[#allocation4 + $0x210] sm:$0xff]
        %v1275 = vld [vmem:[#allocation4 + $0x218] sm:$0xff]
        %v1276 = vld [vmem:[#allocation4 + $0x220] sm:$0xff]
        %v1277 = vld [vmem:[#allocation4 + $0x228] sm:$0xff]
        %v1278 = vld [vmem:[#allocation4 + $0x230] sm:$0xff]
        %v1279 = vld [vmem:[#allocation4 + $0x238] sm:$0xff]
        %v1280 = vld [vmem:[#allocation4 + $0x240] sm:$0xff]
        %v1281 = vld [vmem:[#allocation4 + $0x248] sm:$0xff]
        %v1282 = vld [vmem:[#allocation4 + $0x250] sm:$0xff]
        %v1283 = vld [vmem:[#allocation4 + $0x258] sm:$0xff]
        %v1284 = vld [vmem:[#allocation4 + $0x260] sm:$0xff]
        %v1285 = vld [vmem:[#allocation4 + $0x268] sm:$0xff]
        %v1286 = vld [vmem:[#allocation4 + $0x270] sm:$0xff]
        %v1287 = vld [vmem:[#allocation4 + $0x278] sm:$0xff]
        %v1288 = vld [vmem:[#allocation4 + $0x280] sm:$0xff]
        %v1289 = vld [vmem:[#allocation4 + $0x288] sm:$0xff]
        %v1290 = vld [vmem:[#allocation4 + $0x290] sm:$0xff]
        %v1291 = vld [vmem:[#allocation4 + $0x298] sm:$0xff]
        %v1292 = vld [vmem:[#allocation4 + $0x2a0] sm:$0xff]
        %v1293 = vld [vmem:[#allocation4 + $0x2a8] sm:$0xff]
        %v1294 = vld [vmem:[#allocation4 + $0x2b0] sm:$0xff]
        %v1295 = vld [vmem:[#allocation4 + $0x2b8] sm:$0xff]
        %v1296 = vld [vmem:[#allocation4 + $0x2c0] sm:$0xff]
        %v1297 = vld [vmem:[#allocation4 + $0x2c8] sm:$0xff]
        %v1298 = vld [vmem:[#allocation4 + $0x2d0] sm:$0xff]
        %v1299 = vld [vmem:[#allocation4 + $0x2d8] sm:$0xff]
        %v1300 = vld [vmem:[#allocation4 + $0x2e0] sm:$0xff]
        %v1301 = vld [vmem:[#allocation4 + $0x2e8] sm:$0xff]
        %v1302 = vld [vmem:[#allocation4 + $0x2f0] sm:$0xff]
        %v1303 = vld [vmem:[#allocation4 + $0x2f8] sm:$0xff]
        %v1304 = vld [vmem:[#allocation4 + $0x300] sm:$0xff]
        %v1305 = vld [vmem:[#allocation4 + $0x308] sm:$0xff]
        %v1306 = vld [vmem:[#allocation4 + $0x310] sm:$0xff]
        %v1307 = vld [vmem:[#allocation4 + $0x318] sm:$0xff]
        %v1308 = vld [vmem:[#allocation4 + $0x320] sm:$0xff]
        %v1309 = vld [vmem:[#allocation4 + $0x328] sm:$0xff]
        %v1310 = vld [vmem:[#allocation4 + $0x330] sm:$0xff]
        %v1311 = vld [vmem:[#allocation4 + $0x338] sm:$0xff]
        %v1312 = vld [vmem:[#allocation4 + $0x340] sm:$0xff]
        %v1313 = vld [vmem:[#allocation4 + $0x348] sm:$0xff]
        %v1314 = vld [vmem:[#allocation4 + $0x350] sm:$0xff]
        %v1315 = vld [vmem:[#allocation4 + $0x358] sm:$0xff]
        %v1316 = vld [vmem:[#allocation4 + $0x360] sm:$0xff]
        %v1317 = vld [vmem:[#allocation4 + $0x368] sm:$0xff]
        %v1318 = vld [vmem:[#allocation4 + $0x370] sm:$0xff]
        %v1319 = vld [vmem:[#allocation4 + $0x378] sm:$0xff]
        %v1320 = vld [vmem:[#allocation4 + $0x380] sm:$0xff]
        %v1321 = vld [vmem:[#allocation4 + $0x388] sm:$0xff]
        %v1322 = vld [vmem:[#allocation4 + $0x390] sm:$0xff]
        %v1323 = vld [vmem:[#allocation4 + $0x398] sm:$0xff]
        %v1324 = vld [vmem:[#allocation4 + $0x3a0] sm:$0xff]
        %v1325 = vld [vmem:[#allocation4 + $0x3a8] sm:$0xff]
        %v1326 = vld [vmem:[#allocation4 + $0x3b0] sm:$0xff]
        %v1327 = vld [vmem:[#allocation4 + $0x3b8] sm:$0xff]
        %v1328 = vld [vmem:[#allocation4 + $0x3c0] sm:$0xff]
        %v1329 = vld [vmem:[#allocation4 + $0x3c8] sm:$0xff]
        %v1330 = vld [vmem:[#allocation4 + $0x3d0] sm:$0xff]
        %v1331 = vld [vmem:[#allocation4 + $0x3d8] sm:$0xff]
        %v1332 = vld [vmem:[#allocation4 + $0x3e0] sm:$0xff]
        %v1333 = vld [vmem:[#allocation4 + $0x3e8] sm:$0xff]
        %v1334 = vld [vmem:[#allocation4 + $0x3f0] sm:$0xff]
        %v1335 = vld [vmem:[#allocation4 + $0x3f8] sm:$0xff]
        %v1336 = vld [vmem:[#allocation4 + $0x400] sm:$0xff]
        %v1337 = vld [vmem:[#allocation4 + $0x408] sm:$0xff]
        %v1338 = vld [vmem:[#allocation4 + $0x410] sm:$0xff]
        %v1339 = vld [vmem:[#allocation4 + $0x418] sm:$0xff]
        %v1340 = vld [vmem:[#allocation4 + $0x420] sm:$0xff]
        %v1341 = vld [vmem:[#allocation4 + $0x428] sm:$0xff]
        %v1342 = vld [vmem:[#allocation4 + $0x430] sm:$0xff]
        %v1343 = vld [vmem:[#allocation4 + $0x438] sm:$0xff]
        %v1344 = vld [vmem:[#allocation4 + $0x440] sm:$0xff]
        %v1345 = vld [vmem:[#allocation4 + $0x448] sm:$0xff]
        %v1346 = vld [vmem:[#allocation4 + $0x450] sm:$0xff]
        %v1347 = vld [vmem:[#allocation4 + $0x458] sm:$0xff]
        %v1348 = vld [vmem:[#allocation4 + $0x460] sm:$0xff]
        %v1349 = vld [vmem:[#allocation4 + $0x468] sm:$0xff]
        %v1350 = vld [vmem:[#allocation4 + $0x470] sm:$0xff]
        %v1351 = vld [vmem:[#allocation4 + $0x478] sm:$0xff]
        %1352 = vmatprep.subr.mxu0 0.0
        %1353 = vmatpush1.msra.mxu0 %v1208
        %1354 = vmatprep.subr.mxu0 0.0
        %1355 = vmatpush1.msra.mxu0 %v1209
        %1356 = vmatprep.subr.mxu0 0.0
        %1357 = vmatpush1.msra.mxu0 %v1210
        %1358 = vmatprep.subr.mxu0 0.0
        %1359 = vmatpush1.msra.mxu0 %v1211
        %1360 = vmatprep.subr.mxu0 0.0
        %1361 = vmatpush1.msra.mxu0 %v1212
        %1362 = vmatprep.subr.mxu0 0.0
        %1363 = vmatpush1.msra.mxu0 %v1213
        %1364 = vmatprep.subr.mxu0 0.0
        %1365 = vmatpush1.msra.mxu0 %v1214
        %1366 = vmatprep.subr.mxu0 0.0
        %1367 = vmatpush1.msra.mxu0 %v1215
        %1368 = vmatprep.subr.mxu0 0.0
        %1369 = vmatpush1.msra.mxu0 %v1216
        %1370 = vmatprep.subr.mxu0 0.0
        %1371 = vmatpush1.msra.mxu0 %v1217
        %1372 = vmatprep.subr.mxu0 0.0
        %1373 = vmatpush1.msra.mxu0 %v1218
        %1374 = vmatprep.subr.mxu0 0.0
        %1375 = vmatpush1.msra.mxu0 %v1219
        %1376 = vmatprep.subr.mxu0 0.0
        %1377 = vmatpush1.msra.mxu0 %v1220
        %1378 = vmatprep.subr.mxu0 0.0
        %1379 = vmatpush1.msra.mxu0 %v1221
        %1380 = vmatprep.subr.mxu0 0.0
        %1381 = vmatpush1.msra.mxu0 %v1222
        %1382 = vmatprep.subr.mxu0 0.0
        %1383 = vmatpush1.msra.mxu0 %v1223
        %1384 = vmatprep.subr.mxu0 0.0
        %1385 = vmatpush1.msra.mxu0 %v1224
        %1386 = vmatprep.subr.mxu0 0.0
        %1387 = vmatpush1.msra.mxu0 %v1225
        %1388 = vmatprep.subr.mxu0 0.0
        %1389 = vmatpush1.msra.mxu0 %v1226
        %1390 = vmatprep.subr.mxu0 0.0
        %1391 = vmatpush1.msra.mxu0 %v1227
        %1392 = vmatprep.subr.mxu0 0.0
        %1393 = vmatpush1.msra.mxu0 %v1228
        %1394 = vmatprep.subr.mxu0 0.0
        %1395 = vmatpush1.msra.mxu0 %v1229
        %1396 = vmatprep.subr.mxu0 0.0
        %1397 = vmatpush1.msra.mxu0 %v1230
        %1398 = vmatprep.subr.mxu0 0.0
        %1399 = vmatpush1.msra.mxu0 %v1231
        %1400 = vmatprep.subr.mxu0 0.0
        %1401 = vmatpush1.msra.mxu0 %v1232
        %1402 = vmatprep.subr.mxu0 0.0
        %1403 = vmatpush1.msra.mxu0 %v1233
        %1404 = vmatprep.subr.mxu0 0.0
        %1405 = vmatpush1.msra.mxu0 %v1234
        %1406 = vmatprep.subr.mxu0 0.0
        %1407 = vmatpush1.msra.mxu0 %v1235
        %1408 = vmatprep.subr.mxu0 0.0
        %1409 = vmatpush1.msra.mxu0 %v1236
        %1410 = vmatprep.subr.mxu0 0.0
        %1411 = vmatpush1.msra.mxu0 %v1237
        %1412 = vmatprep.subr.mxu0 0.0
        %1413 = vmatpush1.msra.mxu0 %v1238
        %1414 = vmatprep.subr.mxu0 0.0
        %1415 = vmatpush1.msra.mxu0 %v1239
        %1416 = vmatprep.mubr.f32.mxu0 %v1137
        %1417 = vmatmul.mubr.f32.gmra.mrb[0].mxu0 %v1136
        %v1418 = vpop.f32.mrb[0].mxu0
        %v1419 = vadd.f32 0.0, %v1418
        %v1420 = vpop.f32.mrb[0].mxu0
        %1421 = vmatprep.mubr.f32.mxu0 %v1146
        %1422 = vmatmul.mubr.f32.gmra.mrb[0].mxu0 %v1145
        %v1423 = vpop.f32.mrb[0].mxu0
        %v1424 = vadd.f32 0.0, %v1423
        %v1425 = vpop.f32.mrb[0].mxu0
        %1426 = vmatprep.mubr.f32.mxu0 %v1155
        %1427 = vmatmul.mubr.f32.gmra.mrb[0].mxu0 %v1154
        %v1428 = vpop.f32.mrb[0].mxu0
        %v1429 = vadd.f32 0.0, %v1428
        %v1430 = vpop.f32.mrb[0].mxu0
        %1431 = vmatprep.mubr.f32.mxu0 %v1164
        %1432 = vmatmul.mubr.f32.gmra.mrb[0].mxu0 %v1163
        %v1433 = vpop.f32.mrb[0].mxu0
        %v1434 = vadd.f32 0.0, %v1433
        %v1435 = vpop.f32.mrb[0].mxu0
        %1436 = vmatprep.mubr.f32.mxu0 %v1173
        %1437 = vmatmul.mubr.f32.gmra.mrb[0].mxu0 %v1172
        %v1438 = vpop.f32.mrb[0].mxu0
        %v1439 = vadd.f32 0.0, %v1438
        %v1440 = vpop.f32.mrb[0].mxu0
        %1441 = vmatprep.mubr.f32.mxu0 %v1182
        %1442 = vmatmul.mubr.f32.gmra.mrb[0].mxu0 %v1181
        %v1443 = vpop.f32.mrb[0].mxu0
        %v1444 = vadd.f32 0.0, %v1443
        %v1445 = vpop.f32.mrb[0].mxu0
        %1446 = vmatprep.mubr.f32.mxu0 %v1191
        %1447 = vmatmul.mubr.f32.gmra.mrb[0].mxu0 %v1190
        %v1448 = vpop.f32.mrb[0].mxu0
        %v1449 = vadd.f32 0.0, %v1448
        %v1450 = vpop.f32.mrb[0].mxu0
        %1451 = vmatprep.mubr.f32.mxu0 %v1200
        %1452 = vmatmul.mubr.f32.gmra.mrb[0].mxu0 %v1199
        %v1453 = vpop.f32.mrb[0].mxu0
        %v1454 = vadd.f32 0.0, %v1453
        %v1455 = vpop.f32.mrb[0].mxu0
        %1456 = vdwg.mxu0
        %1457 = vmatprep.subr.mxu0 0.0
        %1458 = vmatpush1.msra.mxu0 %v1240
        %1459 = vmatprep.subr.mxu0 0.0
        %1460 = vmatpush1.msra.mxu0 %v1241
        %1461 = vmatprep.subr.mxu0 0.0
        %1462 = vmatpush1.msra.mxu0 %v1242
        %1463 = vmatprep.subr.mxu0 0.0
        %1464 = vmatpush1.msra.mxu0 %v1243
        %1465 = vmatprep.subr.mxu0 0.0
        %1466 = vmatpush1.msra.mxu0 %v1244
        %1467 = vmatprep.subr.mxu0 0.0
        %1468 = vmatpush1.msra.mxu0 %v1245
        %1469 = vmatprep.subr.mxu0 0.0
        %1470 = vmatpush1.msra.mxu0 %v1246
        %1471 = vmatprep.subr.mxu0 0.0
        %1472 = vmatpush1.msra.mxu0 %v1247
        %1473 = vmatprep.subr.mxu0 0.0
        %1474 = vmatpush1.msra.mxu0 %v1248
        %1475 = vmatprep.subr.mxu0 0.0
        %1476 = vmatpush1.msra.mxu0 %v1249
        %1477 = vmatprep.subr.mxu0 0.0
        %1478 = vmatpush1.msra.mxu0 %v1250
        %1479 = vmatprep.subr.mxu0 0.0
        %1480 = vmatpush1.msra.mxu0 %v1251
        %1481 = vmatprep.subr.mxu0 0.0
        %1482 = vmatpush1.msra.mxu0 %v1252
        %1483 = vmatprep.subr.mxu0 0.0
        %1484 = vmatpush1.msra.mxu0 %v1253
        %1485 = vmatprep.subr.mxu0 0.0
        %1486 = vmatpush1.msra.mxu0 %v1254
        %1487 = vmatprep.subr.mxu0 0.0
        %1488 = vmatpush1.msra.mxu0 %v1255
        %1489 = vmatprep.subr.mxu0 0.0
        %1490 = vmatpush1.msra.mxu0 %v1256
        %1491 = vmatprep.subr.mxu0 0.0
        %1492 = vmatpush1.msra.mxu0 %v1257
        %1493 = vmatprep.subr.mxu0 0.0
        %1494 = vmatpush1.msra.mxu0 %v1258
        %1495 = vmatprep.subr.mxu0 0.0
        %1496 = vmatpush1.msra.mxu0 %v1259
        %1497 = vmatprep.subr.mxu0 0.0
        %1498 = vmatpush1.msra.mxu0 %v1260
        %1499 = vmatprep.subr.mxu0 0.0
        %1500 = vmatpush1.msra.mxu0 %v1261
        %1501 = vmatprep.subr.mxu0 0.0
        %1502 = vmatpush1.msra.mxu0 %v1262
        %1503 = vmatprep.subr.mxu0 0.0
        %1504 = vmatpush1.msra.mxu0 %v1263
        %1505 = vmatprep.subr.mxu0 0.0
        %1506 = vmatpush1.msra.mxu0 %v1264
        %1507 = vmatprep.subr.mxu0 0.0
        %1508 = vmatpush1.msra.mxu0 %v1265
        %1509 = vmatprep.subr.mxu0 0.0
        %1510 = vmatpush1.msra.mxu0 %v1266
        %1511 = vmatprep.subr.mxu0 0.0
        %1512 = vmatpush1.msra.mxu0 %v1267
        %1513 = vmatprep.subr.mxu0 0.0
        %1514 = vmatpush1.msra.mxu0 %v1268
        %1515 = vmatprep.subr.mxu0 0.0
        %1516 = vmatpush1.msra.mxu0 %v1269
        %1517 = vmatprep.subr.mxu0 0.0
        %1518 = vmatpush1.msra.mxu0 %v1270
        %1519 = vmatprep.subr.mxu0 0.0
        %1520 = vmatpush1.msra.mxu0 %v1271
        %1521 = vmatprep.mubr.f32.mxu0 %v1139
        %1522 = vmatmul.mubr.f32.gmra.mrb[0].mxu0 %v1138
        %v1523 = vpop.f32.mrb[0].mxu0
        %v1524 = vadd.f32 %v1419, %v1523
        %v1525 = vpop.f32.mrb[0].mxu0
        %1526 = vmatprep.mubr.f32.mxu0 %v1148
        %1527 = vmatmul.mubr.f32.gmra.mrb[0].mxu0 %v1147
        %v1528 = vpop.f32.mrb[0].mxu0
        %v1529 = vadd.f32 %v1424, %v1528
        %v1530 = vpop.f32.mrb[0].mxu0
        %1531 = vmatprep.mubr.f32.mxu0 %v1157
        %1532 = vmatmul.mubr.f32.gmra.mrb[0].mxu0 %v1156
        %v1533 = vpop.f32.mrb[0].mxu0
        %v1534 = vadd.f32 %v1429, %v1533
        %v1535 = vpop.f32.mrb[0].mxu0
        %1536 = vmatprep.mubr.f32.mxu0 %v1166
        %1537 = vmatmul.mubr.f32.gmra.mrb[0].mxu0 %v1165
        %v1538 = vpop.f32.mrb[0].mxu0
        %v1539 = vadd.f32 %v1434, %v1538
        %v1540 = vpop.f32.mrb[0].mxu0
        %1541 = vmatprep.mubr.f32.mxu0 %v1175
        %1542 = vmatmul.mubr.f32.gmra.mrb[0].mxu0 %v1174
        %v1543 = vpop.f32.mrb[0].mxu0
        %v1544 = vadd.f32 %v1439, %v1543
        %v1545 = vpop.f32.mrb[0].mxu0
        %1546 = vmatprep.mubr.f32.mxu0 %v1184
        %1547 = vmatmul.mubr.f32.gmra.mrb[0].mxu0 %v1183
        %v1548 = vpop.f32.mrb[0].mxu0
        %v1549 = vadd.f32 %v1444, %v1548
        %v1550 = vpop.f32.mrb[0].mxu0
        %1551 = vmatprep.mubr.f32.mxu0 %v1193
        %1552 = vmatmul.mubr.f32.gmra.mrb[0].mxu0 %v1192
        %v1553 = vpop.f32.mrb[0].mxu0
        %v1554 = vadd.f32 %v1449, %v1553
        %v1555 = vpop.f32.mrb[0].mxu0
        %1556 = vmatprep.mubr.f32.mxu0 %v1202
        %1557 = vmatmul.mubr.f32.gmra.mrb[0].mxu0 %v1201
        %v1558 = vpop.f32.mrb[0].mxu0
        %v1559 = vadd.f32 %v1454, %v1558
        %v1560 = vpop.f32.mrb[0].mxu0
        %1561 = vdwg.mxu0
        %1562 = vmatprep.subr.mxu0 0.0
        %1563 = vmatpush1.msra.mxu0 %v1272
        %1564 = vmatprep.subr.mxu0 0.0
        %1565 = vmatpush1.msra.mxu0 %v1273
        %1566 = vmatprep.subr.mxu0 0.0
        %1567 = vmatpush1.msra.mxu0 %v1274
        %1568 = vmatprep.subr.mxu0 0.0
        %1569 = vmatpush1.msra.mxu0 %v1275
        %1570 = vmatprep.subr.mxu0 0.0
        %1571 = vmatpush1.msra.mxu0 %v1276
        %1572 = vmatprep.subr.mxu0 0.0
        %1573 = vmatpush1.msra.mxu0 %v1277
        %1574 = vmatprep.subr.mxu0 0.0
        %1575 = vmatpush1.msra.mxu0 %v1278
        %1576 = vmatprep.subr.mxu0 0.0
        %1577 = vmatpush1.msra.mxu0 %v1279
        %1578 = vmatprep.subr.mxu0 0.0
        %1579 = vmatpush1.msra.mxu0 %v1280
        %1580 = vmatprep.subr.mxu0 0.0
        %1581 = vmatpush1.msra.mxu0 %v1281
        %1582 = vmatprep.subr.mxu0 0.0
        %1583 = vmatpush1.msra.mxu0 %v1282
        %1584 = vmatprep.subr.mxu0 0.0
        %1585 = vmatpush1.msra.mxu0 %v1283
        %1586 = vmatprep.subr.mxu0 0.0
        %1587 = vmatpush1.msra.mxu0 %v1284
        %1588 = vmatprep.subr.mxu0 0.0
        %1589 = vmatpush1.msra.mxu0 %v1285
        %1590 = vmatprep.subr.mxu0 0.0
        %1591 = vmatpush1.msra.mxu0 %v1286
        %1592 = vmatprep.subr.mxu0 0.0
        %1593 = vmatpush1.msra.mxu0 %v1287
        %1594 = vmatprep.subr.mxu0 0.0
        %1595 = vmatpush1.msra.mxu0 %v1288
        %1596 = vmatprep.subr.mxu0 0.0
        %1597 = vmatpush1.msra.mxu0 %v1289
        %1598 = vmatprep.subr.mxu0 0.0
        %1599 = vmatpush1.msra.mxu0 %v1290
        %1600 = vmatprep.subr.mxu0 0.0
        %1601 = vmatpush1.msra.mxu0 %v1291
        %1602 = vmatprep.subr.mxu0 0.0
        %1603 = vmatpush1.msra.mxu0 %v1292
        %1604 = vmatprep.subr.mxu0 0.0
        %1605 = vmatpush1.msra.mxu0 %v1293
        %1606 = vmatprep.subr.mxu0 0.0
        %1607 = vmatpush1.msra.mxu0 %v1294
        %1608 = vmatprep.subr.mxu0 0.0
        %1609 = vmatpush1.msra.mxu0 %v1295
        %1610 = vmatprep.subr.mxu0 0.0
        %1611 = vmatpush1.msra.mxu0 %v1296
        %1612 = vmatprep.subr.mxu0 0.0
        %1613 = vmatpush1.msra.mxu0 %v1297
        %1614 = vmatprep.subr.mxu0 0.0
        %1615 = vmatpush1.msra.mxu0 %v1298
        %1616 = vmatprep.subr.mxu0 0.0
        %1617 = vmatpush1.msra.mxu0 %v1299
        %1618 = vmatprep.subr.mxu0 0.0
        %1619 = vmatpush1.msra.mxu0 %v1300
        %1620 = vmatprep.subr.mxu0 0.0
        %1621 = vmatpush1.msra.mxu0 %v1301
        %1622 = vmatprep.subr.mxu0 0.0
        %1623 = vmatpush1.msra.mxu0 %v1302
        %1624 = vmatprep.subr.mxu0 0.0
        %1625 = vmatpush1.msra.mxu0 %v1303
        %1626 = vmatprep.mubr.f32.mxu0 %v1141
        %1627 = vmatmul.mubr.f32.gmra.mrb[0].mxu0 %v1140
        %v1628 = vpop.f32.mrb[0].mxu0
        %v1629 = vadd.f32 %v1524, %v1628
        %v1630 = vpop.f32.mrb[0].mxu0
        %1631 = vmatprep.mubr.f32.mxu0 %v1150
        %1632 = vmatmul.mubr.f32.gmra.mrb[0].mxu0 %v1149
        %v1633 = vpop.f32.mrb[0].mxu0
        %v1634 = vadd.f32 %v1529, %v1633
        %v1635 = vpop.f32.mrb[0].mxu0
        %1636 = vmatprep.mubr.f32.mxu0 %v1159
        %1637 = vmatmul.mubr.f32.gmra.mrb[0].mxu0 %v1158
        %v1638 = vpop.f32.mrb[0].mxu0
        %v1639 = vadd.f32 %v1534, %v1638
        %v1640 = vpop.f32.mrb[0].mxu0
        %1641 = vmatprep.mubr.f32.mxu0 %v1168
        %1642 = vmatmul.mubr.f32.gmra.mrb[0].mxu0 %v1167
        %v1643 = vpop.f32.mrb[0].mxu0
        %v1644 = vadd.f32 %v1539, %v1643
        %v1645 = vpop.f32.mrb[0].mxu0
        %1646 = vmatprep.mubr.f32.mxu0 %v1177
        %1647 = vmatmul.mubr.f32.gmra.mrb[0].mxu0 %v1176
        %v1648 = vpop.f32.mrb[0].mxu0
        %v1649 = vadd.f32 %v1544, %v1648
        %v1650 = vpop.f32.mrb[0].mxu0
        %1651 = vmatprep.mubr.f32.mxu0 %v1186
        %1652 = vmatmul.mubr.f32.gmra.mrb[0].mxu0 %v1185
        %v1653 = vpop.f32.mrb[0].mxu0
        %v1654 = vadd.f32 %v1549, %v1653
        %v1655 = vpop.f32.mrb[0].mxu0
        %1656 = vmatprep.mubr.f32.mxu0 %v1195
        %1657 = vmatmul.mubr.f32.gmra.mrb[0].mxu0 %v1194
        %v1658 = vpop.f32.mrb[0].mxu0
        %v1659 = vadd.f32 %v1554, %v1658
        %v1660 = vpop.f32.mrb[0].mxu0
        %1661 = vmatprep.mubr.f32.mxu0 %v1204
        %1662 = vmatmul.mubr.f32.gmra.mrb[0].mxu0 %v1203
        %v1663 = vpop.f32.mrb[0].mxu0
        %v1664 = vadd.f32 %v1559, %v1663
        %v1665 = vpop.f32.mrb[0].mxu0
        %1666 = vdwg.mxu0
        %1667 = vmatprep.subr.mxu0 0.0
        %1668 = vmatpush1.msra.mxu0 %v1304
        %1669 = vmatprep.subr.mxu0 0.0
        %1670 = vmatpush1.msra.mxu0 %v1305
        %1671 = vmatprep.subr.mxu0 0.0
        %1672 = vmatpush1.msra.mxu0 %v1306
        %1673 = vmatprep.subr.mxu0 0.0
        %1674 = vmatpush1.msra.mxu0 %v1307
        %1675 = vmatprep.subr.mxu0 0.0
        %1676 = vmatpush1.msra.mxu0 %v1308
        %1677 = vmatprep.subr.mxu0 0.0
        %1678 = vmatpush1.msra.mxu0 %v1309
        %1679 = vmatprep.subr.mxu0 0.0
        %1680 = vmatpush1.msra.mxu0 %v1310
        %1681 = vmatprep.subr.mxu0 0.0
        %1682 = vmatpush1.msra.mxu0 %v1311
        %1683 = vmatprep.subr.mxu0 0.0
        %1684 = vmatpush1.msra.mxu0 %v1312
        %1685 = vmatprep.subr.mxu0 0.0
        %1686 = vmatpush1.msra.mxu0 %v1313
        %1687 = vmatprep.subr.mxu0 0.0
        %1688 = vmatpush1.msra.mxu0 %v1314
        %1689 = vmatprep.subr.mxu0 0.0
        %1690 = vmatpush1.msra.mxu0 %v1315
        %1691 = vmatprep.subr.mxu0 0.0
        %1692 = vmatpush1.msra.mxu0 %v1316
        %1693 = vmatprep.subr.mxu0 0.0
        %1694 = vmatpush1.msra.mxu0 %v1317
        %1695 = vmatprep.subr.mxu0 0.0
        %1696 = vmatpush1.msra.mxu0 %v1318
        %1697 = vmatprep.subr.mxu0 0.0
        %1698 = vmatpush1.msra.mxu0 %v1319
        %1699 = vmatprep.subr.mxu0 0.0
        %1700 = vmatpush1.msra.mxu0 %v1320
        %1701 = vmatprep.subr.mxu0 0.0
        %1702 = vmatpush1.msra.mxu0 %v1321
        %1703 = vmatprep.subr.mxu0 0.0
        %1704 = vmatpush1.msra.mxu0 %v1322
        %1705 = vmatprep.subr.mxu0 0.0
        %1706 = vmatpush1.msra.mxu0 %v1323
        %1707 = vmatprep.subr.mxu0 0.0
        %1708 = vmatpush1.msra.mxu0 %v1324
        %1709 = vmatprep.subr.mxu0 0.0
        %1710 = vmatpush1.msra.mxu0 %v1325
        %1711 = vmatprep.subr.mxu0 0.0
        %1712 = vmatpush1.msra.mxu0 %v1326
        %1713 = vmatprep.subr.mxu0 0.0
        %1714 = vmatpush1.msra.mxu0 %v1327
        %1715 = vmatprep.subr.mxu0 0.0
        %1716 = vmatpush1.msra.mxu0 %v1328
        %1717 = vmatprep.subr.mxu0 0.0
        %1718 = vmatpush1.msra.mxu0 %v1329
        %1719 = vmatprep.subr.mxu0 0.0
        %1720 = vmatpush1.msra.mxu0 %v1330
        %1721 = vmatprep.subr.mxu0 0.0
        %1722 = vmatpush1.msra.mxu0 %v1331
        %1723 = vmatprep.subr.mxu0 0.0
        %1724 = vmatpush1.msra.mxu0 %v1332
        %1725 = vmatprep.subr.mxu0 0.0
        %1726 = vmatpush1.msra.mxu0 %v1333
        %1727 = vmatprep.subr.mxu0 0.0
        %1728 = vmatpush1.msra.mxu0 %v1334
        %1729 = vmatprep.subr.mxu0 0.0
        %1730 = vmatpush1.msra.mxu0 %v1335
        %1731 = vmatprep.mubr.f32.mxu0 %v1143
        %1732 = vmatmul.mubr.f32.gmra.mrb[0].mxu0 %v1142
        %v1733 = vpop.f32.mrb[0].mxu0
        %v1734 = vadd.f32 %v1629, %v1733
        %v1735 = vpop.f32.mrb[0].mxu0
        %1736 = vmatprep.mubr.f32.mxu0 %v1152
        %1737 = vmatmul.mubr.f32.gmra.mrb[0].mxu0 %v1151
        %v1738 = vpop.f32.mrb[0].mxu0
        %v1739 = vadd.f32 %v1634, %v1738
        %v1740 = vpop.f32.mrb[0].mxu0
        %1741 = vmatprep.mubr.f32.mxu0 %v1161
        %1742 = vmatmul.mubr.f32.gmra.mrb[0].mxu0 %v1160
        %v1743 = vpop.f32.mrb[0].mxu0
        %v1744 = vadd.f32 %v1639, %v1743
        %v1745 = vpop.f32.mrb[0].mxu0
        %1746 = vmatprep.mubr.f32.mxu0 %v1170
        %1747 = vmatmul.mubr.f32.gmra.mrb[0].mxu0 %v1169
        %v1748 = vpop.f32.mrb[0].mxu0
        %v1749 = vadd.f32 %v1644, %v1748
        %v1750 = vpop.f32.mrb[0].mxu0
        %1751 = vmatprep.mubr.f32.mxu0 %v1179
        %1752 = vmatmul.mubr.f32.gmra.mrb[0].mxu0 %v1178
        %v1753 = vpop.f32.mrb[0].mxu0
        %v1754 = vadd.f32 %v1649, %v1753
        %v1755 = vpop.f32.mrb[0].mxu0
        %1756 = vmatprep.mubr.f32.mxu0 %v1188
        %1757 = vmatmul.mubr.f32.gmra.mrb[0].mxu0 %v1187
        %v1758 = vpop.f32.mrb[0].mxu0
        %v1759 = vadd.f32 %v1654, %v1758
        %v1760 = vpop.f32.mrb[0].mxu0
        %1761 = vmatprep.mubr.f32.mxu0 %v1197
        %1762 = vmatmul.mubr.f32.gmra.mrb[0].mxu0 %v1196
        %v1763 = vpop.f32.mrb[0].mxu0
        %v1764 = vadd.f32 %v1659, %v1763
        %v1765 = vpop.f32.mrb[0].mxu0
        %1766 = vmatprep.mubr.f32.mxu0 %v1206
        %1767 = vmatmul.mubr.f32.gmra.mrb[0].mxu0 %v1205
        %v1768 = vpop.f32.mrb[0].mxu0
        %v1769 = vadd.f32 %v1664, %v1768
        %v1770 = vpop.f32.mrb[0].mxu0
        %1771 = vdwg.mxu0
        %1772 = vmatprep.subr.mxu0 0.0
        %1773 = vmatpush1.msra.mxu0 %v1336
        %1774 = vmatprep.subr.mxu0 0.0
        %1775 = vmatpush1.msra.mxu0 %v1337
        %1776 = vmatprep.subr.mxu0 0.0
        %1777 = vmatpush1.msra.mxu0 %v1338
        %1778 = vmatprep.subr.mxu0 0.0
        %1779 = vmatpush1.msra.mxu0 %v1339
        %1780 = vmatprep.subr.mxu0 0.0
        %1781 = vmatpush1.msra.mxu0 %v1340
        %1782 = vmatprep.subr.mxu0 0.0
        %1783 = vmatpush1.msra.mxu0 %v1341
        %1784 = vmatprep.subr.mxu0 0.0
        %1785 = vmatpush1.msra.mxu0 %v1342
        %1786 = vmatprep.subr.mxu0 0.0
        %1787 = vmatpush1.msra.mxu0 %v1343
        %1788 = vmatprep.subr.mxu0 0.0
        %1789 = vmatpush1.msra.mxu0 %v1344
        %1790 = vmatprep.subr.mxu0 0.0
        %1791 = vmatpush1.msra.mxu0 %v1345
        %1792 = vmatprep.subr.mxu0 0.0
        %1793 = vmatpush1.msra.mxu0 %v1346
        %1794 = vmatprep.subr.mxu0 0.0
        %1795 = vmatpush1.msra.mxu0 %v1347
        %1796 = vmatprep.subr.mxu0 0.0
        %1797 = vmatpush1.msra.mxu0 %v1348
        %1798 = vmatprep.subr.mxu0 0.0
        %1799 = vmatpush1.msra.mxu0 %v1349
        %1800 = vmatprep.subr.mxu0 0.0
        %1801 = vmatpush1.msra.mxu0 %v1350
        %1802 = vmatprep.subr.mxu0 0.0
        %1803 = vmatpush1.msra.mxu0 %v1351
        %1804 = vmatprep.subr.mxu0 0.0
        %1805 = vmatpush1.msra.mxu0 0.0
        %1806 = vmatprep.subr.mxu0 0.0
        %1807 = vmatpush1.msra.mxu0 0.0
        %1808 = vmatprep.subr.mxu0 0.0
        %1809 = vmatpush1.msra.mxu0 0.0
        %1810 = vmatprep.subr.mxu0 0.0
        %1811 = vmatpush1.msra.mxu0 0.0
        %1812 = vmatprep.subr.mxu0 0.0
        %1813 = vmatpush1.msra.mxu0 0.0
        %1814 = vmatprep.subr.mxu0 0.0
        %1815 = vmatpush1.msra.mxu0 0.0
        %1816 = vmatprep.subr.mxu0 0.0
        %1817 = vmatpush1.msra.mxu0 0.0
        %1818 = vmatprep.subr.mxu0 0.0
        %1819 = vmatpush1.msra.mxu0 0.0
        %1820 = vmatprep.subr.mxu0 0.0
        %1821 = vmatpush1.msra.mxu0 0.0
        %1822 = vmatprep.subr.mxu0 0.0
        %1823 = vmatpush1.msra.mxu0 0.0
        %1824 = vmatprep.subr.mxu0 0.0
        %1825 = vmatpush1.msra.mxu0 0.0
        %1826 = vmatprep.subr.mxu0 0.0
        %1827 = vmatpush1.msra.mxu0 0.0
        %1828 = vmatprep.subr.mxu0 0.0
        %1829 = vmatpush1.msra.mxu0 0.0
        %1830 = vmatprep.subr.mxu0 0.0
        %1831 = vmatpush1.msra.mxu0 0.0
        %1832 = vmatprep.subr.mxu0 0.0
        %1833 = vmatpush1.msra.mxu0 0.0
        %1834 = vmatprep.subr.mxu0 0.0
        %1835 = vmatpush1.msra.mxu0 0.0
        %1836 = vmatprep.mubr.f32.mxu0 0.0
        %1837 = vmatmul.mubr.f32.gmra.mrb[0].mxu0 %v1144
        %v1838 = vpop.f32.mrb[0].mxu0
        %v1839 = vadd.f32 %v1734, %v1838
        %v1840 = vpop.f32.mrb[0].mxu0
        %1841 = vmatprep.mubr.f32.mxu0 0.0
        %1842 = vmatmul.mubr.f32.gmra.mrb[0].mxu0 %v1153
        %v1843 = vpop.f32.mrb[0].mxu0
        %v1844 = vadd.f32 %v1739, %v1843
        %v1845 = vpop.f32.mrb[0].mxu0
        %1846 = vmatprep.mubr.f32.mxu0 0.0
        %1847 = vmatmul.mubr.f32.gmra.mrb[0].mxu0 %v1162
        %v1848 = vpop.f32.mrb[0].mxu0
        %v1849 = vadd.f32 %v1744, %v1848
        %v1850 = vpop.f32.mrb[0].mxu0
        %1851 = vmatprep.mubr.f32.mxu0 0.0
        %1852 = vmatmul.mubr.f32.gmra.mrb[0].mxu0 %v1171
        %v1853 = vpop.f32.mrb[0].mxu0
        %v1854 = vadd.f32 %v1749, %v1853
        %v1855 = vpop.f32.mrb[0].mxu0
        %1856 = vmatprep.mubr.f32.mxu0 0.0
        %1857 = vmatmul.mubr.f32.gmra.mrb[0].mxu0 %v1180
        %v1858 = vpop.f32.mrb[0].mxu0
        %v1859 = vadd.f32 %v1754, %v1858
        %v1860 = vpop.f32.mrb[0].mxu0
        %1861 = vmatprep.mubr.f32.mxu0 0.0
        %1862 = vmatmul.mubr.f32.gmra.mrb[0].mxu0 %v1189
        %v1863 = vpop.f32.mrb[0].mxu0
        %v1864 = vadd.f32 %v1759, %v1863
        %v1865 = vpop.f32.mrb[0].mxu0
        %1866 = vmatprep.mubr.f32.mxu0 0.0
        %1867 = vmatmul.mubr.f32.gmra.mrb[0].mxu0 %v1198
        %v1868 = vpop.f32.mrb[0].mxu0
        %v1869 = vadd.f32 %v1764, %v1868
        %v1870 = vpop.f32.mrb[0].mxu0
        %1871 = vmatprep.mubr.f32.mxu0 0.0
        %1872 = vmatmul.mubr.f32.gmra.mrb[0].mxu0 %v1207
        %v1873 = vpop.f32.mrb[0].mxu0
        %v1874 = vadd.f32 %v1769, %v1873
        %v1875 = vpop.f32.mrb[0].mxu0
        %1876 = vdwg.mxu0
        %v1877 = vld [vmem:[%s5] sm:$0x1]
        %v1878 = vld [vmem:[%s6] sm:$0x1]
        %v1880 = vlaneseq
        %v1881 = vshrl.u32 %v1880, 7
        %v1882 = vsub.s32 0, %v1881
        %v1883 = vrot.slane %v1877, %v1882
        %v1885 = vmul.f32 %v1839, %v1883
        %v1886 = vmul.f32 %v1844, %v1883
        %v1887 = vmul.f32 %v1849, %v1883
        %v1888 = vmul.f32 %v1854, %v1883
        %v1889 = vmul.f32 %v1859, %v1883
        %v1890 = vmul.f32 %v1864, %v1883
        %v1891 = vmul.f32 %v1869, %v1883
        %v1892 = vmul.f32 %v1874, %v1883
        %v1894 = vlaneseq
        %v1895 = vshrl.u32 %v1894, 7
        %v1896 = vsub.s32 0, %v1895
        %v1897 = vrot.slane %v1878, %v1896
        %v1899 = vadd.f32 %v1885, %v1897
        %v1900 = vadd.f32 %v1886, %v1897
        %v1901 = vadd.f32 %v1887, %v1897
        %v1902 = vadd.f32 %v1888, %v1897
        %v1903 = vadd.f32 %v1889, %v1897
        %v1904 = vadd.f32 %v1890, %v1897
        %v1905 = vadd.f32 %v1891, %v1897
        %v1906 = vadd.f32 %v1892, %v1897
        %v1907 = vmin.f32 %v1899, 20.0
        %v1908 = vmin.f32 %v1900, 20.0
        %v1909 = vmin.f32 %v1901, 20.0
        %v1910 = vmin.f32 %v1902, 20.0
        %v1911 = vmin.f32 %v1903, 20.0
        %v1912 = vmin.f32 %v1904, 20.0
        %v1913 = vmin.f32 %v1905, 20.0
        %v1914 = vmin.f32 %v1906, 20.0
        %v1915 = vmul.f32 %v1907, 1.442695
        %v1916 = vpow.pop %v1915
        %v1917 = vmul.f32 %v1908, 1.442695
        %v1918 = vpow.pop %v1917
        %v1919 = vmul.f32 %v1909, 1.442695
        %v1920 = vpow.pop %v1919
        %v1921 = vmul.f32 %v1910, 1.442695
        %v1922 = vpow.pop %v1921
        %v1923 = vmul.f32 %v1911, 1.442695
        %v1924 = vpow.pop %v1923
        %v1925 = vmul.f32 %v1912, 1.442695
        %v1926 = vpow.pop %v1925
        %v1927 = vmul.f32 %v1913, 1.442695
        %v1928 = vpow.pop %v1927
        %v1929 = vmul.f32 %v1914, 1.442695
        %v1930 = vpow.pop %v1929
        %v1931 = vadd.f32 %v1916, 1.0
        %v1932 = vadd.f32 %v1918, 1.0
        %v1933 = vadd.f32 %v1920, 1.0
        %v1934 = vadd.f32 %v1922, 1.0
        %v1935 = vadd.f32 %v1924, 1.0
        %v1936 = vadd.f32 %v1926, 1.0
        %v1937 = vadd.f32 %v1928, 1.0
        %v1938 = vadd.f32 %v1930, 1.0
        %v1939 = vmul.f32 %v1931, %v1931
        %v1940 = vmul.f32 %v1932, %v1932
        %v1941 = vmul.f32 %v1933, %v1933
        %v1942 = vmul.f32 %v1934, %v1934
        %v1943 = vmul.f32 %v1935, %v1935
        %v1944 = vmul.f32 %v1936, %v1936
        %v1945 = vmul.f32 %v1937, %v1937
        %v1946 = vmul.f32 %v1938, %v1938
        %vm1947 = vcmp.gt.f32.partialorder %v1899, 20.0
        %vm1948 = vcmp.gt.f32.partialorder %v1900, 20.0
        %vm1949 = vcmp.gt.f32.partialorder %v1901, 20.0
        %vm1950 = vcmp.gt.f32.partialorder %v1902, 20.0
        %vm1951 = vcmp.gt.f32.partialorder %v1903, 20.0
        %vm1952 = vcmp.gt.f32.partialorder %v1904, 20.0
        %vm1953 = vcmp.gt.f32.partialorder %v1905, 20.0
        %vm1954 = vcmp.gt.f32.partialorder %v1906, 20.0
        %v1955 = vsub.f32 %v1939, 1.0
        %v1956 = vsub.f32 %v1940, 1.0
        %v1957 = vsub.f32 %v1941, 1.0
        %v1958 = vsub.f32 %v1942, 1.0
        %v1959 = vsub.f32 %v1943, 1.0
        %v1960 = vsub.f32 %v1944, 1.0
        %v1961 = vsub.f32 %v1945, 1.0
        %v1962 = vsub.f32 %v1946, 1.0
        %v1963 = vadd.f32 %v1939, 1.0
        %v1964 = vadd.f32 %v1940, 1.0
        %v1965 = vadd.f32 %v1941, 1.0
        %v1966 = vadd.f32 %v1942, 1.0
        %v1967 = vadd.f32 %v1943, 1.0
        %v1968 = vadd.f32 %v1944, 1.0
        %v1969 = vadd.f32 %v1945, 1.0
        %v1970 = vadd.f32 %v1946, 1.0
        %v1971 = vrcp.pop %v1963
        %v1972 = vrcp.pop %v1964
        %v1973 = vrcp.pop %v1965
        %v1974 = vrcp.pop %v1966
        %v1975 = vrcp.pop %v1967
        %v1976 = vrcp.pop %v1968
        %v1977 = vrcp.pop %v1969
        %v1978 = vrcp.pop %v1970
        %v1979 = vmul.f32 %v1955, %v1971
        %v1980 = vmul.f32 %v1956, %v1972
        %v1981 = vmul.f32 %v1957, %v1973
        %v1982 = vmul.f32 %v1958, %v1974
        %v1983 = vmul.f32 %v1959, %v1975
        %v1984 = vmul.f32 %v1960, %v1976
        %v1985 = vmul.f32 %v1961, %v1977
        %v1986 = vmul.f32 %v1962, %v1978
        %v1987 = vsel %vm1947, 1.0, %v1979
        %v1988 = vsel %vm1948, 1.0, %v1980
        %v1989 = vsel %vm1949, 1.0, %v1981
        %v1990 = vsel %vm1950, 1.0, %v1982
        %v1991 = vsel %vm1951, 1.0, %v1983
        %v1992 = vsel %vm1952, 1.0, %v1984
        %v1993 = vsel %vm1953, 1.0, %v1985
        %v1994 = vsel %vm1954, 1.0, %v1986
        %v1995 = vmul.f32 %v1899, %v1987
        %v1996 = vmul.f32 %v1900, %v1988
        %v1997 = vmul.f32 %v1901, %v1989
        %v1998 = vmul.f32 %v1902, %v1990
        %v1999 = vmul.f32 %v1903, %v1991
        %v2000 = vmul.f32 %v1904, %v1992
        %v2001 = vmul.f32 %v1905, %v1993
        %v2002 = vmul.f32 %v1906, %v1994
        %2003 = vst [vmem:[%s293] sm:$0xff] %v1995
        %2004 = vst [vmem:[%s293 + $0x8] sm:$0xff] %v1996
        %2005 = vst [vmem:[%s293 + $0x10] sm:$0xff] %v1997
        %2006 = vst [vmem:[%s293 + $0x18] sm:$0xff] %v1998
        %2007 = vst [vmem:[%s293 + $0x20] sm:$0xff] %v1999
        %2008 = vst [vmem:[%s293 + $0x28] sm:$0xff] %v2000
        %2009 = vst [vmem:[%s293 + $0x30] sm:$0xff] %v2001
        %2010 = vst [vmem:[%s293 + $0x38] sm:$0xff] %v2002
        %p2011 = scmp.lt.s32.totalorder %s19, 1
        %s2012 = scalar_select %p2011, %s19, 1
        %s2013 = smul.addr %s2012, 8
        %s2014 = smul.addr %s2013, 8
        %s2015 = scalar_lea.vmem %s7, %s2014
        // Predicated region
        $region53: #{down_forward.1} parent=47 // pred_check
          %p2016 = pneg %p189
        $region54: #{down_forward.1} parent=47 // pred_check_branch
          %2018 = sbr.rel (%p2016) target = $region56
        $region55: #{down_forward.1} parent=47 // pred_region
          _
        $region56: #{down_forward.1} parent=47 // pred_fallthru
          _
      $region48: #{down_forward.1} parent=5 // pred_fallthru
        _
      %p2019 = scmp.le.s32.totalorder 2, %s14
      // Predicated region
      $region57: #{down_forward.1} parent=5 // pred_check
        %p2020 = pneg %p2019
      $region58: #{down_forward.1} parent=5 // pred_check_branch
        %2022 = sbr.rel (%p2020) target = $region60
      $region59: #{down_forward.1} parent=5 // pred_region
        %s2023 = ssub.s32 %s14, 2
        // Predicated region
        $region61: #{down_forward.1} parent=59 // pred_check
          %p2024 = pneg %p195
        $region62: #{down_forward.1} parent=59 // pred_check_branch
          %2026 = sbr.rel (%p2024) target = $region64
        $region63: #{down_forward.1} parent=59 // pred_region
          %p2027 = scmp.lt.s32.totalorder %s20, 1
          %s2028 = scalar_select %p2027, %s20, 1
          %s2029 = smul.addr %s2028, 8
          %s2030 = smul.addr %s2029, 8
          %s2031 = scalar_lea.vmem %s7, %s2030
        $region64: #{down_forward.1} parent=59 // pred_fallthru
          _
      $region60: #{down_forward.1} parent=5 // pred_fallthru
        _
    $region6: #{down_forward.1} parent=1 // loop_footer
      %s18 = sadd.s32 1, %s14
    $region7: #{down_forward.1} parent=1 // loop_footer_branch
      %13 = sbr.rel target = $region3
    $region8: #{down_forward.1} parent=1 // loop_exit
      _
    %2032 = vsyncpa [#allocation5], 1
    %s2033 = scalar_lea.sflag [#allocation5], 1
    %2034 = vsyncpa %s2033, 1

</llo_original>
